<compile_context>
chip_gen: v7x
topology: tpu7x:2x2x1
jax: 0.10.0
libtpu: 0.0.40
codegen_flags: <defaults>
</compile_context>

<pallas_src>
import functools

import jax
import jax.numpy as jnp
from jax.experimental import pallas as pl
from jax.experimental.pallas import tpu as pltpu

LANE = 128
SUB = 16  # bf16 sublane packing (also a multiple of the f32 requirement of 8)


def _round_up(n, m):
    return ((n + m - 1) // m) * m


def _num_tensorcores():
    """Best-effort count of TensorCores behind one JAX device."""
    try:
        kind = getattr(jax.devices()[0], "device_kind", "").lower()
    except Exception:
        return 1
    if "v7" in kind or "7x" in kind:
        return 2  # v7x: 2 TCs per chip
    if "v4" in kind or "v5p" in kind:
        return 2  # megacore parts
    return 1  # v5e / v6e: single TC


def dqn_kernel(x_ref, w1_ref, b1_ref, w2_ref, b2_ref, w3_ref, b3_ref, o_ref):
    # Layer 1: Linear + ReLU (bf16 operands, f32 accumulation on the MXU).
    h1 = jnp.dot(x_ref[...], w1_ref[...], preferred_element_type=jnp.float32)
    h1 = jnp.maximum(h1 + b1_ref[...], 0.0).astype(w2_ref.dtype)
    # Layer 2: Linear + ReLU
    h2 = jnp.dot(h1, w2_ref[...], preferred_element_type=jnp.float32)
    h2 = jnp.maximum(h2 + b2_ref[...], 0.0).astype(w3_ref.dtype)
    # Output layer: Linear (no activation); bias column padding is zeros.
    out = jnp.dot(h2, w3_ref[...], preferred_element_type=jnp.float32)
    o_ref[...] = (out + b3_ref[...]).astype(o_ref.dtype)


@functools.partial(jax.jit, static_argnames=("block_b",))
def dqn_forward_padded(x, w1, b1, w2, b2, w3, b3, *, block_b=4096):
    """Batched DQN forward returning the lane-padded (B_pad, round_up(out,128)) output."""
    B, in_dim = x.shape
    hidden1 = w1.shape[1]
    hidden2 = w2.shape[1]
    out_dim = w3.shape[1]

    # Lane-dense padding: input columns -> 128 (contiguous x DMA, unmasked vld),
    # output columns -> 128 (unmasked vst).  Zero pads are mathematically inert.
    in_p = _round_up(in_dim, LANE)
    out_p = _round_up(out_dim, LANE)
    if in_p != in_dim:
        x = jnp.pad(x, ((0, 0), (0, in_p - in_dim)))
        w1 = jnp.pad(w1, ((0, in_p - in_dim), (0, 0)))
    if out_p != out_dim:
        w3 = jnp.pad(w3, ((0, 0), (0, out_p - out_dim)))
        b3 = jnp.pad(b3, ((0, 0), (0, out_p - out_dim)))

    # bf16 operands for native MXU rate; biases stay f32 (added to f32 accumulator).
    x = x.astype(jnp.bfloat16)
    w1 = w1.astype(jnp.bfloat16)
    w2 = w2.astype(jnp.bfloat16)
    w3 = w3.astype(jnp.bfloat16)

    # Tile selection: one tile per TensorCore (1 grid step on v5e/v6e, 2 parallel
    # steps on v7x/megacore), capped at block_b for very large batches.
    num_tc = _num_tensorcores()
    tb = min(block_b, _round_up(-(-B // num_tc), SUB))
    tb = _round_up(tb, SUB)
    b_p = _round_up(B, tb)
    if b_p != B:
        x = jnp.pad(x, ((0, b_p - B), (0, 0)))
    grid = (b_p // tb,)

    # Weights/biases: same block index every grid step -> DMA'd once, VMEM-resident.
    def resident(shape):
        return pl.BlockSpec(shape, lambda i: (0, 0))

    flops = 2 * b_p * (in_p * hidden1 + hidden1 * hidden2 + hidden2 * out_p)
    bytes_accessed = (
        x.size * x.dtype.itemsize
        + sum(a.size * a.dtype.itemsize for a in (w1, b1, w2, b2, w3, b3))
        + b_p * out_p * 4
    )
    cost = pl.CostEstimate(
        flops=flops, transcendentals=0, bytes_accessed=bytes_accessed
    )

    out_padded = pl.pallas_call(
        dqn_kernel,
        out_shape=jax.ShapeDtypeStruct((b_p, out_p), jnp.float32),
        grid=grid,
        in_specs=[
            pl.BlockSpec((tb, in_p), lambda i: (i, 0)),  # x streams per tile
            resident((in_p, hidden1)),
            resident((1, hidden1)),
            resident((hidden1, hidden2)),
            resident((1, hidden2)),
            resident((hidden2, out_p)),
            resident((1, out_p)),
        ],
        out_specs=pl.BlockSpec((tb, out_p), lambda i: (i, 0)),
        compiler_params=pltpu.CompilerParams(
            dimension_semantics=("parallel",),  # one tile per TC on 2-TC parts
        ),
        cost_estimate=cost,
    )(x, w1, b1, w2, b2, w3, b3)

    return out_padded


@functools.partial(jax.jit, static_argnames=("block_b",))
def dqn_forward(x, w1, b1, w2, b2, w3, b3, *, block_b=4096):
    """Convenience wrapper: slices the padded output back to (B, out_dim).

    Note: callers chasing the last bit of HBM bandwidth should consume
    dqn_forward_padded's lane-padded layout directly (the slice is an extra
    pass over the output unless fused by the caller's jit).
    """
    out_dim = w3.shape[1]
    out_padded = dqn_forward_padded(x, w1, b1, w2, b2, w3, b3, block_b=block_b)
    return out_padded[: x.shape[0], :out_dim]


def init_linear_params(key, in_dim, out_dim):
    """Deterministic init mimicking PyTorch nn.Linear default (uniform +/- 1/sqrt(fan_in))."""
    kw, kb = jax.random.split(key)
    bound = 1.0 / jnp.sqrt(jnp.float32(in_dim))
    w = jax.random.uniform(kw, (in_dim, out_dim), jnp.float32, -bound, bound)
    b = jax.random.uniform(kb, (1, out_dim), jnp.float32, -bound, bound)
    return w, b


def reference_forward(x, w1, b1, w2, b2, w3, b3):
    h1 = jnp.maximum(x @ w1 + b1, 0.0)
    h2 = jnp.maximum(h1 @ w2 + b2, 0.0)
    return h2 @ w3 + b3


if __name__ == "__main__":
    # Shapes consistent with the module default: DQN(input_dim, output_dim,
    # hidden_dims=[128, 128]); RPS-style 6-feature state, 3 actions.
    batch = 512
    input_dim = 6
    hidden = 128
    output_dim = 3

    key = jax.random.PRNGKey(0)
    kx, k1, k2, k3 = jax.random.split(key, 4)

    x = jax.random.normal(kx, (batch, input_dim), jnp.float32)
    w1, b1 = init_linear_params(k1, input_dim, hidden)
    w2, b2 = init_linear_params(k2, hidden, hidden)
    w3, b3 = init_linear_params(k3, hidden, output_dim)

    ref = reference_forward(x, w1, b1, w2, b2, w3, b3)

    # Batched path (1 grid step on single-TC parts, 2 parallel steps on v7x).
    out = dqn_forward(x, w1, b1, w2, b2, w3, b3)
    out = jax.block_until_ready(out)
    assert out.shape == (batch, output_dim)
    # bf16 operands (f32 accumulation) -> loosened tolerance vs the f32 reference.
    assert jnp.allclose(out, ref, atol=2e-2, rtol=2e-2)

    # Ragged / tiny batch path (exercises batch padding, single grid step).
    out_small = dqn_forward(x[:13], w1, b1, w2, b2, w3, b3)
    out_small = jax.block_until_ready(out_small)
    assert out_small.shape == (13, output_dim)
    assert jnp.allclose(out_small, ref[:13], atol=2e-2, rtol=2e-2)

    # Padded-layout path (no post-call slice; consumer-side layout).
    out_pad = jax.block_until_ready(dqn_forward_padded(x, w1, b1, w2, b2, w3, b3))
    assert out_pad.shape[1] == 128
    assert jnp.allclose(out_pad[:batch, :output_dim], ref, atol=2e-2, rtol=2e-2)

    print("KERNEL_OK")
</pallas_src>

<mosaic_0001>
module attributes {stable_mosaic.version = 11 : i64} {
  func.func @dqn_kernel(%arg0: i32, %arg1: memref<512x128xbf16, #tpu.memory_space<vmem>>, %arg2: memref<128x128xbf16, #tpu.memory_space<vmem>>, %arg3: memref<1x128xf32, #tpu.memory_space<vmem>>, %arg4: memref<128x128xbf16, #tpu.memory_space<vmem>>, %arg5: memref<1x128xf32, #tpu.memory_space<vmem>>, %arg6: memref<128x128xbf16, #tpu.memory_space<vmem>>, %arg7: memref<1x128xf32, #tpu.memory_space<vmem>>, %arg8: memref<512x128xf32, #tpu.memory_space<vmem>>) attributes {dimension_semantics = [#tpu.dimension_semantics<parallel>], iteration_bounds = array<i64: 1>, scalar_prefetch = 0 : i64, scratch_operands = 0 : i64, tpu.core_type = #tpu.core_type<tc>, window_params = [{transform_indices = @transform_0, window_bounds = array<i64: 512, 128>}, {pipeline_mode = #tpu.pipeline_mode<synchronous>, transform_indices = @transform_1, window_bounds = array<i64: 128, 128>}, {pipeline_mode = #tpu.pipeline_mode<synchronous>, transform_indices = @transform_2, window_bounds = array<i64: 1, 128>}, {pipeline_mode = #tpu.pipeline_mode<synchronous>, transform_indices = @transform_3, window_bounds = array<i64: 128, 128>}, {pipeline_mode = #tpu.pipeline_mode<synchronous>, transform_indices = @transform_4, window_bounds = array<i64: 1, 128>}, {pipeline_mode = #tpu.pipeline_mode<synchronous>, transform_indices = @transform_5, window_bounds = array<i64: 128, 128>}, {pipeline_mode = #tpu.pipeline_mode<synchronous>, transform_indices = @transform_6, window_bounds = array<i64: 1, 128>}, {transform_indices = @transform_7, window_bounds = array<i64: 512, 128>}]} {
    %c0 = arith.constant 0 : index
    %c0_0 = arith.constant 0 : index
    %0 = vector.load %arg1[%c0, %c0_0] : memref<512x128xbf16, #tpu.memory_space<vmem>>, vector<512x128xbf16>
    %c0_1 = arith.constant 0 : index
    %c0_2 = arith.constant 0 : index
    %1 = vector.load %arg2[%c0_1, %c0_2] : memref<128x128xbf16, #tpu.memory_space<vmem>>, vector<128x128xbf16>
    %cst = arith.constant dense<0.000000e+00> : vector<512x128xf32>
    %2 = tpu.matmul %0, %1, %cst {dimension_numbers = #tpu.dot_dimension_numbers<[1], [0], [0], [1], [0, 0, 1, 1], [], []>} : vector<512x128xbf16>, vector<128x128xbf16>, vector<512x128xf32> -> vector<512x128xf32>
    %c0_3 = arith.constant 0 : index
    %c0_4 = arith.constant 0 : index
    %3 = vector.load %arg3[%c0_3, %c0_4] : memref<1x128xf32, #tpu.memory_space<vmem>>, vector<1x128xf32>
    %4 = vector.broadcast %3 : vector<1x128xf32> to vector<512x128xf32>
    %5 = arith.addf %2, %4 : vector<512x128xf32>
    %cst_5 = arith.constant 0.000000e+00 : f32
    %6 = vector.broadcast %cst_5 : f32 to vector<512x128xf32>
    %7 = arith.maximumf %5, %6 : vector<512x128xf32>
    %8 = arith.truncf %7 : vector<512x128xf32> to vector<512x128xbf16>
    %c0_6 = arith.constant 0 : index
    %c0_7 = arith.constant 0 : index
    %9 = vector.load %arg4[%c0_6, %c0_7] : memref<128x128xbf16, #tpu.memory_space<vmem>>, vector<128x128xbf16>
    %cst_8 = arith.constant dense<0.000000e+00> : vector<512x128xf32>
    %10 = tpu.matmul %8, %9, %cst_8 {dimension_numbers = #tpu.dot_dimension_numbers<[1], [0], [0], [1], [0, 0, 1, 1], [], []>} : vector<512x128xbf16>, vector<128x128xbf16>, vector<512x128xf32> -> vector<512x128xf32>
    %c0_9 = arith.constant 0 : index
    %c0_10 = arith.constant 0 : index
    %11 = vector.load %arg5[%c0_9, %c0_10] : memref<1x128xf32, #tpu.memory_space<vmem>>, vector<1x128xf32>
    %12 = vector.broadcast %11 : vector<1x128xf32> to vector<512x128xf32>
    %13 = arith.addf %10, %12 : vector<512x128xf32>
    %cst_11 = arith.constant 0.000000e+00 : f32
    %14 = vector.broadcast %cst_11 : f32 to vector<512x128xf32>
    %15 = arith.maximumf %13, %14 : vector<512x128xf32>
    %16 = arith.truncf %15 : vector<512x128xf32> to vector<512x128xbf16>
    %c0_12 = arith.constant 0 : index
    %c0_13 = arith.constant 0 : index
    %17 = vector.load %arg6[%c0_12, %c0_13] : memref<128x128xbf16, #tpu.memory_space<vmem>>, vector<128x128xbf16>
    %cst_14 = arith.constant dense<0.000000e+00> : vector<512x128xf32>
    %18 = tpu.matmul %16, %17, %cst_14 {dimension_numbers = #tpu.dot_dimension_numbers<[1], [0], [0], [1], [0, 0, 1, 1], [], []>} : vector<512x128xbf16>, vector<128x128xbf16>, vector<512x128xf32> -> vector<512x128xf32>
    %c0_15 = arith.constant 0 : index
    %c0_16 = arith.constant 0 : index
    %19 = vector.load %arg7[%c0_15, %c0_16] : memref<1x128xf32, #tpu.memory_space<vmem>>, vector<1x128xf32>
    %20 = vector.broadcast %19 : vector<1x128xf32> to vector<512x128xf32>
    %21 = arith.addf %18, %20 : vector<512x128xf32>
    %c0_17 = arith.constant 0 : index
    %c0_18 = arith.constant 0 : index
    %22 = vector.load %arg8[%c0_17, %c0_18] : memref<512x128xf32, #tpu.memory_space<vmem>>, vector<512x128xf32>
    tpu.vector_store %arg8[%c0_17, %c0_18], %21 {strides = array<i32>} : memref<512x128xf32, #tpu.memory_space<vmem>>, vector<512x128xf32>,
    return
  }
  func.func @transform_0(%arg0: i32) -> (i32, i32) {
    %c0_i32 = arith.constant 0 : i32
    %c0_i32_0 = arith.constant 0 : i32
    return %arg0, %c0_i32 : i32, i32
  }
  func.func @transform_1(%arg0: i32) -> (i32, i32) {
    %c0_i32 = arith.constant 0 : i32
    %c0_i32_0 = arith.constant 0 : i32
    %c0_i32_1 = arith.constant 0 : i32
    return %c0_i32, %c0_i32_0 : i32, i32
  }
  func.func @transform_2(%arg0: i32) -> (i32, i32) {
    %c0_i32 = arith.constant 0 : i32
    %c0_i32_0 = arith.constant 0 : i32
    %c0_i32_1 = arith.constant 0 : i32
    return %c0_i32, %c0_i32_0 : i32, i32
  }
  func.func @transform_3(%arg0: i32) -> (i32, i32) {
    %c0_i32 = arith.constant 0 : i32
    %c0_i32_0 = arith.constant 0 : i32
    %c0_i32_1 = arith.constant 0 : i32
    return %c0_i32, %c0_i32_0 : i32, i32
  }
  func.func @transform_4(%arg0: i32) -> (i32, i32) {
    %c0_i32 = arith.constant 0 : i32
    %c0_i32_0 = arith.constant 0 : i32
    %c0_i32_1 = arith.constant 0 : i32
    return %c0_i32, %c0_i32_0 : i32, i32
  }
  func.func @transform_5(%arg0: i32) -> (i32, i32) {
    %c0_i32 = arith.constant 0 : i32
    %c0_i32_0 = arith.constant 0 : i32
    %c0_i32_1 = arith.constant 0 : i32
    return %c0_i32, %c0_i32_0 : i32, i32
  }
  func.func @transform_6(%arg0: i32) -> (i32, i32) {
    %c0_i32 = arith.constant 0 : i32
    %c0_i32_0 = arith.constant 0 : i32
    %c0_i32_1 = arith.constant 0 : i32
    return %c0_i32, %c0_i32_0 : i32, i32
  }
  func.func @transform_7(%arg0: i32) -> (i32, i32) {
    %c0_i32 = arith.constant 0 : i32
    %c0_i32_0 = arith.constant 0 : i32
    return %arg0, %c0_i32 : i32, i32
  }
}

</mosaic_0001>

<llo_original>
// kernel: dqn_forward_padded.1
$region0: #{dqn_forward_padded.1}
  #allocation0 [shape = 'u32[]', space=smem, size = 0x4, offset = 0x4, fixed_abs, tag = 'smem constant byte address 0x4 - core index']
  #allocation1 [shape = 'u32[144,128]{1,0:T(1,128)}', space=vmem, size = 0x12000, scoped, tag = 'internal scratch']
  %s0 = inlined_call_operand.vmem [shape: bf16[512,128], index: 0, kind: input, shape index: {}]
  %s1 = inlined_call_operand.vmem [shape: bf16[128,128], index: 1, kind: input, shape index: {}]
  %s2 = inlined_call_operand.vmem [shape: f32[1,128], index: 2, kind: input, shape index: {}]
  %s3 = inlined_call_operand.vmem [shape: bf16[128,128], index: 3, kind: input, shape index: {}]
  %s4 = inlined_call_operand.vmem [shape: f32[1,128], index: 4, kind: input, shape index: {}]
  %s5 = inlined_call_operand.vmem [shape: bf16[128,128], index: 5, kind: input, shape index: {}]
  %s6 = inlined_call_operand.vmem [shape: f32[1,128], index: 6, kind: input, shape index: {}]
  %s7 = inlined_call_operand.hbm [shape: f32[512,128], index: 7, kind: output, shape index: {}]
  %s8 = sld [smem:[#allocation0]]
  $region38: #{dqn_forward_padded.1} parent=0
    _
  %s10 = ssub.s32 1, %s8
  %s11 = scalar_select 0, %s10, %s8
  $region1: #{dqn_forward_padded.1} parent=0
    #allocation2 [shape = 'u8[262144]{0}', space=vmem, size = 0x40000, scoped, tag = 'output window, operand 0, single buffered']
    #allocation3 [shape = 's32[1]{0}', space=sflag, size = 0x4, scoped, tag = 'scoped memory for dqn_forward_padded.1']
    %12 = vsyncpa [#allocation3], 0
    // Predicated region
    $region2: #{dqn_forward_padded.1} parent=1 // pred_check
      _
    $region3: #{dqn_forward_padded.1} parent=1 // pred_check_branch
      %14 = sbr.rel (0) target = $region5
    $region4: #{dqn_forward_padded.1} parent=1 // pred_region
      _
    $region5: #{dqn_forward_padded.1} parent=1 // pred_fallthru
      _
    // Predicated region
    $region6: #{dqn_forward_padded.1} parent=1 // pred_check
      _
    $region7: #{dqn_forward_padded.1} parent=1 // pred_check_branch
      %16 = sbr.rel (0) target = $region9
    $region8: #{dqn_forward_padded.1} parent=1 // pred_region
      _
    $region9: #{dqn_forward_padded.1} parent=1 // pred_fallthru
      _
    // Predicated region
    $region10: #{dqn_forward_padded.1} parent=1 // pred_check
      _
    $region11: #{dqn_forward_padded.1} parent=1 // pred_check_branch
      %18 = sbr.rel (0) target = $region13
    $region12: #{dqn_forward_padded.1} parent=1 // pred_region
      _
    $region13: #{dqn_forward_padded.1} parent=1 // pred_fallthru
      _
    // Predicated region
    $region14: #{dqn_forward_padded.1} parent=1 // pred_check
      _
    $region15: #{dqn_forward_padded.1} parent=1 // pred_check_branch
      %20 = sbr.rel (0) target = $region17
    $region16: #{dqn_forward_padded.1} parent=1 // pred_region
      _
    $region17: #{dqn_forward_padded.1} parent=1 // pred_fallthru
      _
    // Predicated region
    $region18: #{dqn_forward_padded.1} parent=1 // pred_check
      _
    $region19: #{dqn_forward_padded.1} parent=1 // pred_check_branch
      %22 = sbr.rel (0) target = $region21
    $region20: #{dqn_forward_padded.1} parent=1 // pred_region
      _
    $region21: #{dqn_forward_padded.1} parent=1 // pred_fallthru
      _
    // Predicated region
    $region22: #{dqn_forward_padded.1} parent=1 // pred_check
      _
    $region23: #{dqn_forward_padded.1} parent=1 // pred_check_branch
      %24 = sbr.rel (0) target = $region25
    $region24: #{dqn_forward_padded.1} parent=1 // pred_region
      _
    $region25: #{dqn_forward_padded.1} parent=1 // pred_fallthru
      _
    // Predicated region
    $region26: #{dqn_forward_padded.1} parent=1 // pred_check
      _
    $region27: #{dqn_forward_padded.1} parent=1 // pred_check_branch
      %26 = sbr.rel (0) target = $region29
    $region28: #{dqn_forward_padded.1} parent=1 // pred_region
      _
    $region29: #{dqn_forward_padded.1} parent=1 // pred_fallthru
      _
    %v28 = vld [vmem:[%s0] sm:$0xf]
    %v29 = vld [vmem:[%s0 + $0x4] sm:$0xf]
    %v30 = vld [vmem:[%s0 + $0x8] sm:$0xf]
    %v31 = vld [vmem:[%s0 + $0xc] sm:$0xf]
    %v32 = vld [vmem:[%s0 + $0x10] sm:$0xf]
    %v33 = vld [vmem:[%s0 + $0x14] sm:$0xf]
    %v34 = vld [vmem:[%s0 + $0x18] sm:$0xf]
    %v35 = vld [vmem:[%s0 + $0x1c] sm:$0xf]
    %v36 = vld [vmem:[%s0 + $0x20] sm:$0xf]
    %v37 = vld [vmem:[%s0 + $0x24] sm:$0xf]
    %v38 = vld [vmem:[%s0 + $0x28] sm:$0xf]
    %v39 = vld [vmem:[%s0 + $0x2c] sm:$0xf]
    %v40 = vld [vmem:[%s0 + $0x30] sm:$0xf]
    %v41 = vld [vmem:[%s0 + $0x34] sm:$0xf]
    %v42 = vld [vmem:[%s0 + $0x38] sm:$0xf]
    %v43 = vld [vmem:[%s0 + $0x3c] sm:$0xf]
    %v44 = vld [vmem:[%s0 + $0x40] sm:$0xf]
    %v45 = vld [vmem:[%s0 + $0x44] sm:$0xf]
    %v46 = vld [vmem:[%s0 + $0x48] sm:$0xf]
    %v47 = vld [vmem:[%s0 + $0x4c] sm:$0xf]
    %v48 = vld [vmem:[%s0 + $0x50] sm:$0xf]
    %v49 = vld [vmem:[%s0 + $0x54] sm:$0xf]
    %v50 = vld [vmem:[%s0 + $0x58] sm:$0xf]
    %v51 = vld [vmem:[%s0 + $0x5c] sm:$0xf]
    %v52 = vld [vmem:[%s0 + $0x60] sm:$0xf]
    %v53 = vld [vmem:[%s0 + $0x64] sm:$0xf]
    %v54 = vld [vmem:[%s0 + $0x68] sm:$0xf]
    %v55 = vld [vmem:[%s0 + $0x6c] sm:$0xf]
    %v56 = vld [vmem:[%s0 + $0x70] sm:$0xf]
    %v57 = vld [vmem:[%s0 + $0x74] sm:$0xf]
    %v58 = vld [vmem:[%s0 + $0x78] sm:$0xf]
    %v59 = vld [vmem:[%s0 + $0x7c] sm:$0xf]
    %v60 = vld [vmem:[%s0 + $0x80] sm:$0xf]
    %v61 = vld [vmem:[%s0 + $0x84] sm:$0xf]
    %v62 = vld [vmem:[%s0 + $0x88] sm:$0xf]
    %v63 = vld [vmem:[%s0 + $0x8c] sm:$0xf]
    %v64 = vld [vmem:[%s0 + $0x90] sm:$0xf]
    %v65 = vld [vmem:[%s0 + $0x94] sm:$0xf]
    %v66 = vld [vmem:[%s0 + $0x98] sm:$0xf]
    %v67 = vld [vmem:[%s0 + $0x9c] sm:$0xf]
    %v68 = vld [vmem:[%s0 + $0xa0] sm:$0xf]
    %v69 = vld [vmem:[%s0 + $0xa4] sm:$0xf]
    %v70 = vld [vmem:[%s0 + $0xa8] sm:$0xf]
    %v71 = vld [vmem:[%s0 + $0xac] sm:$0xf]
    %v72 = vld [vmem:[%s0 + $0xb0] sm:$0xf]
    %v73 = vld [vmem:[%s0 + $0xb4] sm:$0xf]
    %v74 = vld [vmem:[%s0 + $0xb8] sm:$0xf]
    %v75 = vld [vmem:[%s0 + $0xbc] sm:$0xf]
    %v76 = vld [vmem:[%s0 + $0xc0] sm:$0xf]
    %v77 = vld [vmem:[%s0 + $0xc4] sm:$0xf]
    %v78 = vld [vmem:[%s0 + $0xc8] sm:$0xf]
    %v79 = vld [vmem:[%s0 + $0xcc] sm:$0xf]
    %v80 = vld [vmem:[%s0 + $0xd0] sm:$0xf]
    %v81 = vld [vmem:[%s0 + $0xd4] sm:$0xf]
    %v82 = vld [vmem:[%s0 + $0xd8] sm:$0xf]
    %v83 = vld [vmem:[%s0 + $0xdc] sm:$0xf]
    %v84 = vld [vmem:[%s0 + $0xe0] sm:$0xf]
    %v85 = vld [vmem:[%s0 + $0xe4] sm:$0xf]
    %v86 = vld [vmem:[%s0 + $0xe8] sm:$0xf]
    %v87 = vld [vmem:[%s0 + $0xec] sm:$0xf]
    %v88 = vld [vmem:[%s0 + $0xf0] sm:$0xf]
    %v89 = vld [vmem:[%s0 + $0xf4] sm:$0xf]
    %v90 = vld [vmem:[%s0 + $0xf8] sm:$0xf]
    %v91 = vld [vmem:[%s0 + $0xfc] sm:$0xf]
    %v92 = vld [vmem:[%s1] sm:$0xf]
    %v93 = vld [vmem:[%s1 + $0x4] sm:$0xf]
    %v94 = vld [vmem:[%s1 + $0x8] sm:$0xf]
    %v95 = vld [vmem:[%s1 + $0xc] sm:$0xf]
    %v96 = vld [vmem:[%s1 + $0x10] sm:$0xf]
    %v97 = vld [vmem:[%s1 + $0x14] sm:$0xf]
    %v98 = vld [vmem:[%s1 + $0x18] sm:$0xf]
    %v99 = vld [vmem:[%s1 + $0x1c] sm:$0xf]
    %v100 = vld [vmem:[%s1 + $0x20] sm:$0xf]
    %v101 = vld [vmem:[%s1 + $0x24] sm:$0xf]
    %v102 = vld [vmem:[%s1 + $0x28] sm:$0xf]
    %v103 = vld [vmem:[%s1 + $0x2c] sm:$0xf]
    %v104 = vld [vmem:[%s1 + $0x30] sm:$0xf]
    %v105 = vld [vmem:[%s1 + $0x34] sm:$0xf]
    %v106 = vld [vmem:[%s1 + $0x38] sm:$0xf]
    %v107 = vld [vmem:[%s1 + $0x3c] sm:$0xf]
    %v108 = vld [vmem:[%s2] sm:$0x1]
    %v110 = vlaneseq
    %v111 = vshrl.u32 %v110, 7
    %v112 = vsub.s32 0, %v111
    %v113 = vrot.slane %v108, %v112
    %v179 = vunpack.c.l.b16 %v28
    %v180 = vunpack.c.l.b16 %v29
    %v181 = vunpack.c.l.b16 %v30
    %v182 = vunpack.c.l.b16 %v31
    %v183 = vunpack.c.l.b16 %v32
    %v184 = vunpack.c.l.b16 %v33
    %v185 = vunpack.c.l.b16 %v34
    %v186 = vunpack.c.l.b16 %v35
    %v187 = vunpack.c.l.b16 %v36
    %v188 = vunpack.c.l.b16 %v37
    %v189 = vunpack.c.l.b16 %v38
    %v190 = vunpack.c.l.b16 %v39
    %v191 = vunpack.c.l.b16 %v40
    %v192 = vunpack.c.l.b16 %v41
    %v193 = vunpack.c.l.b16 %v42
    %v194 = vunpack.c.l.b16 %v43
    %v195 = vunpack.c.l.b16 %v44
    %v196 = vunpack.c.l.b16 %v45
    %v197 = vunpack.c.l.b16 %v46
    %v198 = vunpack.c.l.b16 %v47
    %v199 = vunpack.c.l.b16 %v48
    %v200 = vunpack.c.l.b16 %v49
    %v201 = vunpack.c.l.b16 %v50
    %v202 = vunpack.c.l.b16 %v51
    %v203 = vunpack.c.l.b16 %v52
    %v204 = vunpack.c.l.b16 %v53
    %v205 = vunpack.c.l.b16 %v54
    %v206 = vunpack.c.l.b16 %v55
    %v207 = vunpack.c.l.b16 %v56
    %v208 = vunpack.c.l.b16 %v57
    %v209 = vunpack.c.l.b16 %v58
    %v210 = vunpack.c.l.b16 %v59
    %v211 = vunpack.c.l.b16 %v60
    %v212 = vunpack.c.l.b16 %v61
    %v213 = vunpack.c.l.b16 %v62
    %v214 = vunpack.c.l.b16 %v63
    %v215 = vunpack.c.l.b16 %v64
    %v216 = vunpack.c.l.b16 %v65
    %v217 = vunpack.c.l.b16 %v66
    %v218 = vunpack.c.l.b16 %v67
    %v219 = vunpack.c.l.b16 %v68
    %v220 = vunpack.c.l.b16 %v69
    %v221 = vunpack.c.l.b16 %v70
    %v222 = vunpack.c.l.b16 %v71
    %v223 = vunpack.c.l.b16 %v72
    %v224 = vunpack.c.l.b16 %v73
    %v225 = vunpack.c.l.b16 %v74
    %v226 = vunpack.c.l.b16 %v75
    %v227 = vunpack.c.l.b16 %v76
    %v228 = vunpack.c.l.b16 %v77
    %v229 = vunpack.c.l.b16 %v78
    %v230 = vunpack.c.l.b16 %v79
    %v231 = vunpack.c.l.b16 %v80
    %v232 = vunpack.c.l.b16 %v81
    %v233 = vunpack.c.l.b16 %v82
    %v234 = vunpack.c.l.b16 %v83
    %v235 = vunpack.c.l.b16 %v84
    %v236 = vunpack.c.l.b16 %v85
    %v237 = vunpack.c.l.b16 %v86
    %v238 = vunpack.c.l.b16 %v87
    %v239 = vunpack.c.l.b16 %v88
    %v240 = vunpack.c.l.b16 %v89
    %v241 = vunpack.c.l.b16 %v90
    %v242 = vunpack.c.l.b16 %v91
    %v243 = vpack.c.b16 %v180, %v179
    %v244 = vpack.c.b16 %v182, %v181
    %v245 = vpack.c.b16 %v184, %v183
    %v246 = vpack.c.b16 %v186, %v185
    %v247 = vpack.c.b16 %v188, %v187
    %v248 = vpack.c.b16 %v190, %v189
    %v249 = vpack.c.b16 %v192, %v191
    %v250 = vpack.c.b16 %v194, %v193
    %v251 = vpack.c.b16 %v196, %v195
    %v252 = vpack.c.b16 %v198, %v197
    %v253 = vpack.c.b16 %v200, %v199
    %v254 = vpack.c.b16 %v202, %v201
    %v255 = vpack.c.b16 %v204, %v203
    %v256 = vpack.c.b16 %v206, %v205
    %v257 = vpack.c.b16 %v208, %v207
    %v258 = vpack.c.b16 %v210, %v209
    %v259 = vpack.c.b16 %v212, %v211
    %v260 = vpack.c.b16 %v214, %v213
    %v261 = vpack.c.b16 %v216, %v215
    %v262 = vpack.c.b16 %v218, %v217
    %v263 = vpack.c.b16 %v220, %v219
    %v264 = vpack.c.b16 %v222, %v221
    %v265 = vpack.c.b16 %v224, %v223
    %v266 = vpack.c.b16 %v226, %v225
    %v267 = vpack.c.b16 %v228, %v227
    %v268 = vpack.c.b16 %v230, %v229
    %v269 = vpack.c.b16 %v232, %v231
    %v270 = vpack.c.b16 %v234, %v233
    %v271 = vpack.c.b16 %v236, %v235
    %v272 = vpack.c.b16 %v238, %v237
    %v273 = vpack.c.b16 %v240, %v239
    %v274 = vpack.c.b16 %v242, %v241
    %v323 = vunpack.c.l.b16 %v92
    %v324 = vunpack.c.l.b16 %v93
    %v325 = vunpack.c.l.b16 %v94
    %v326 = vunpack.c.l.b16 %v95
    %v327 = vunpack.c.l.b16 %v96
    %v328 = vunpack.c.l.b16 %v97
    %v329 = vunpack.c.l.b16 %v98
    %v330 = vunpack.c.l.b16 %v99
    %v331 = vunpack.c.l.b16 %v100
    %v332 = vunpack.c.l.b16 %v101
    %v333 = vunpack.c.l.b16 %v102
    %v334 = vunpack.c.l.b16 %v103
    %v335 = vunpack.c.l.b16 %v104
    %v336 = vunpack.c.l.b16 %v105
    %v337 = vunpack.c.l.b16 %v106
    %v338 = vunpack.c.l.b16 %v107
    %v339 = vpack.c.b16 %v324, %v323
    %v340 = vpack.c.b16 %v326, %v325
    %v341 = vpack.c.b16 %v328, %v327
    %v342 = vpack.c.b16 %v330, %v329
    %v343 = vpack.c.b16 %v332, %v331
    %v344 = vpack.c.b16 %v334, %v333
    %v345 = vpack.c.b16 %v336, %v335
    %v346 = vpack.c.b16 %v338, %v337
    %355 = vmatprep.subr.bf16.mxu0 0
    %356 = vmatpush1.bf16.msra.mxu0 %v339
    %357 = vmatprep.subr.bf16.mxu0 0
    %358 = vmatpush1.bf16.msra.mxu0 %v340
    %359 = vmatprep.subr.bf16.mxu0 0
    %360 = vmatpush1.bf16.msra.mxu0 %v341
    %361 = vmatprep.subr.bf16.mxu0 0
    %362 = vmatpush1.bf16.msra.mxu0 %v342
    %363 = vmatprep.subr.bf16.mxu0 0
    %364 = vmatpush1.bf16.msra.mxu0 %v343
    %365 = vmatprep.subr.bf16.mxu0 0
    %366 = vmatpush1.bf16.msra.mxu0 %v344
    %367 = vmatprep.subr.bf16.mxu0 0
    %368 = vmatpush1.bf16.msra.mxu0 %v345
    %369 = vmatprep.subr.bf16.mxu0 0
    %370 = vmatpush1.bf16.msra.mxu0 %v346
    %371 = vmatprep.subr.bf16.mxu0 0
    %372 = vmatpush1.bf16.msra.mxu0 0
    %373 = vmatprep.subr.bf16.mxu0 0
    %374 = vmatpush1.bf16.msra.mxu0 0
    %375 = vmatprep.subr.bf16.mxu0 0
    %376 = vmatpush1.bf16.msra.mxu0 0
    %377 = vmatprep.subr.bf16.mxu0 0
    %378 = vmatpush1.bf16.msra.mxu0 0
    %379 = vmatprep.subr.bf16.mxu0 0
    %380 = vmatpush1.bf16.msra.mxu0 0
    %381 = vmatprep.subr.bf16.mxu0 0
    %382 = vmatpush1.bf16.msra.mxu0 0
    %383 = vmatprep.subr.bf16.mxu0 0
    %384 = vmatpush1.bf16.msra.mxu0 0
    %385 = vmatprep.subr.bf16.mxu0 0
    %386 = vmatpush1.bf16.msra.mxu0 0
    %387 = vmatprep.mubr.bf16.mxu0 0
    %388 = vmatmul.mubr.bf16.gmra.mrb[0].mxu0 %v243
    %v389 = vpop.f32.mrb[0].mxu0
    %v390 = vadd.f32 %v113, %v389
    %v391 = vpop.f32.mrb[0].mxu0
    %v392 = vpop.f32.mrb[0].mxu0
    %v393 = vadd.f32 %v113, %v392
    %v394 = vpop.f32.mrb[0].mxu0
    %395 = vmatprep.mubr.bf16.mxu0 0
    %396 = vmatmul.mubr.bf16.gmra.mrb[0].mxu0 %v244
    %v397 = vpop.f32.mrb[0].mxu0
    %v398 = vadd.f32 %v113, %v397
    %v399 = vpop.f32.mrb[0].mxu0
    %v400 = vpop.f32.mrb[0].mxu0
    %v401 = vadd.f32 %v113, %v400
    %v402 = vpop.f32.mrb[0].mxu0
    %403 = vmatprep.mubr.bf16.mxu0 0
    %404 = vmatmul.mubr.bf16.gmra.mrb[0].mxu0 %v245
    %v405 = vpop.f32.mrb[0].mxu0
    %v406 = vadd.f32 %v113, %v405
    %v407 = vpop.f32.mrb[0].mxu0
    %v408 = vpop.f32.mrb[0].mxu0
    %v409 = vadd.f32 %v113, %v408
    %v410 = vpop.f32.mrb[0].mxu0
    %411 = vmatprep.mubr.bf16.mxu0 0
    %412 = vmatmul.mubr.bf16.gmra.mrb[0].mxu0 %v246
    %v413 = vpop.f32.mrb[0].mxu0
    %v414 = vadd.f32 %v113, %v413
    %v415 = vpop.f32.mrb[0].mxu0
    %v416 = vpop.f32.mrb[0].mxu0
    %v417 = vadd.f32 %v113, %v416
    %v418 = vpop.f32.mrb[0].mxu0
    %419 = vmatprep.mubr.bf16.mxu0 0
    %420 = vmatmul.mubr.bf16.gmra.mrb[0].mxu0 %v247
    %v421 = vpop.f32.mrb[0].mxu0
    %v422 = vadd.f32 %v113, %v421
    %v423 = vpop.f32.mrb[0].mxu0
    %v424 = vpop.f32.mrb[0].mxu0
    %v425 = vadd.f32 %v113, %v424
    %v426 = vpop.f32.mrb[0].mxu0
    %427 = vmatprep.mubr.bf16.mxu0 0
    %428 = vmatmul.mubr.bf16.gmra.mrb[0].mxu0 %v248
    %v429 = vpop.f32.mrb[0].mxu0
    %v430 = vadd.f32 %v113, %v429
    %v431 = vpop.f32.mrb[0].mxu0
    %v432 = vpop.f32.mrb[0].mxu0
    %v433 = vadd.f32 %v113, %v432
    %v434 = vpop.f32.mrb[0].mxu0
    %435 = vmatprep.mubr.bf16.mxu0 0
    %436 = vmatmul.mubr.bf16.gmra.mrb[0].mxu0 %v249
    %v437 = vpop.f32.mrb[0].mxu0
    %v438 = vadd.f32 %v113, %v437
    %v439 = vpop.f32.mrb[0].mxu0
    %v440 = vpop.f32.mrb[0].mxu0
    %v441 = vadd.f32 %v113, %v440
    %v442 = vpop.f32.mrb[0].mxu0
    %443 = vmatprep.mubr.bf16.mxu0 0
    %444 = vmatmul.mubr.bf16.gmra.mrb[0].mxu0 %v250
    %v445 = vpop.f32.mrb[0].mxu0
    %v446 = vadd.f32 %v113, %v445
    %v447 = vpop.f32.mrb[0].mxu0
    %v448 = vpop.f32.mrb[0].mxu0
    %v449 = vadd.f32 %v113, %v448
    %v450 = vpop.f32.mrb[0].mxu0
    %451 = vmatprep.mubr.bf16.mxu0 0
    %452 = vmatmul.mubr.bf16.gmra.mrb[0].mxu0 %v251
    %v453 = vpop.f32.mrb[0].mxu0
    %v454 = vadd.f32 %v113, %v453
    %v455 = vpop.f32.mrb[0].mxu0
    %v456 = vpop.f32.mrb[0].mxu0
    %v457 = vadd.f32 %v113, %v456
    %v458 = vpop.f32.mrb[0].mxu0
    %459 = vmatprep.mubr.bf16.mxu0 0
    %460 = vmatmul.mubr.bf16.gmra.mrb[0].mxu0 %v252
    %v461 = vpop.f32.mrb[0].mxu0
    %v462 = vadd.f32 %v113, %v461
    %v463 = vpop.f32.mrb[0].mxu0
    %v464 = vpop.f32.mrb[0].mxu0
    %v465 = vadd.f32 %v113, %v464
    %v466 = vpop.f32.mrb[0].mxu0
    %467 = vmatprep.mubr.bf16.mxu0 0
    %468 = vmatmul.mubr.bf16.gmra.mrb[0].mxu0 %v253
    %v469 = vpop.f32.mrb[0].mxu0
    %v470 = vadd.f32 %v113, %v469
    %v471 = vpop.f32.mrb[0].mxu0
    %v472 = vpop.f32.mrb[0].mxu0
    %v473 = vadd.f32 %v113, %v472
    %v474 = vpop.f32.mrb[0].mxu0
    %475 = vmatprep.mubr.bf16.mxu0 0
    %476 = vmatmul.mubr.bf16.gmra.mrb[0].mxu0 %v254
    %v477 = vpop.f32.mrb[0].mxu0
    %v478 = vadd.f32 %v113, %v477
    %v479 = vpop.f32.mrb[0].mxu0
    %v480 = vpop.f32.mrb[0].mxu0
    %v481 = vadd.f32 %v113, %v480
    %v482 = vpop.f32.mrb[0].mxu0
    %483 = vmatprep.mubr.bf16.mxu0 0
    %484 = vmatmul.mubr.bf16.gmra.mrb[0].mxu0 %v255
    %v485 = vpop.f32.mrb[0].mxu0
    %v486 = vadd.f32 %v113, %v485
    %v487 = vpop.f32.mrb[0].mxu0
    %v488 = vpop.f32.mrb[0].mxu0
    %v489 = vadd.f32 %v113, %v488
    %v490 = vpop.f32.mrb[0].mxu0
    %491 = vmatprep.mubr.bf16.mxu0 0
    %492 = vmatmul.mubr.bf16.gmra.mrb[0].mxu0 %v256
    %v493 = vpop.f32.mrb[0].mxu0
    %v494 = vadd.f32 %v113, %v493
    %v495 = vpop.f32.mrb[0].mxu0
    %v496 = vpop.f32.mrb[0].mxu0
    %v497 = vadd.f32 %v113, %v496
    %v498 = vpop.f32.mrb[0].mxu0
    %499 = vmatprep.mubr.bf16.mxu0 0
    %500 = vmatmul.mubr.bf16.gmra.mrb[0].mxu0 %v257
    %v501 = vpop.f32.mrb[0].mxu0
    %v502 = vadd.f32 %v113, %v501
    %v503 = vpop.f32.mrb[0].mxu0
    %v504 = vpop.f32.mrb[0].mxu0
    %v505 = vadd.f32 %v113, %v504
    %v506 = vpop.f32.mrb[0].mxu0
    %507 = vmatprep.mubr.bf16.mxu0 0
    %508 = vmatmul.mubr.bf16.gmra.mrb[0].mxu0 %v258
    %v509 = vpop.f32.mrb[0].mxu0
    %v510 = vadd.f32 %v113, %v509
    %v511 = vpop.f32.mrb[0].mxu0
    %v512 = vpop.f32.mrb[0].mxu0
    %v513 = vadd.f32 %v113, %v512
    %v514 = vpop.f32.mrb[0].mxu0
    %515 = vmatprep.mubr.bf16.mxu0 0
    %516 = vmatmul.mubr.bf16.gmra.mrb[0].mxu0 %v259
    %v517 = vpop.f32.mrb[0].mxu0
    %v518 = vadd.f32 %v113, %v517
    %v519 = vpop.f32.mrb[0].mxu0
    %v520 = vpop.f32.mrb[0].mxu0
    %v521 = vadd.f32 %v113, %v520
    %v522 = vpop.f32.mrb[0].mxu0
    %523 = vmatprep.mubr.bf16.mxu0 0
    %524 = vmatmul.mubr.bf16.gmra.mrb[0].mxu0 %v260
    %v525 = vpop.f32.mrb[0].mxu0
    %v526 = vadd.f32 %v113, %v525
    %v527 = vpop.f32.mrb[0].mxu0
    %v528 = vpop.f32.mrb[0].mxu0
    %v529 = vadd.f32 %v113, %v528
    %v530 = vpop.f32.mrb[0].mxu0
    %531 = vmatprep.mubr.bf16.mxu0 0
    %532 = vmatmul.mubr.bf16.gmra.mrb[0].mxu0 %v261
    %v533 = vpop.f32.mrb[0].mxu0
    %v534 = vadd.f32 %v113, %v533
    %v535 = vpop.f32.mrb[0].mxu0
    %v536 = vpop.f32.mrb[0].mxu0
    %v537 = vadd.f32 %v113, %v536
    %v538 = vpop.f32.mrb[0].mxu0
    %539 = vmatprep.mubr.bf16.mxu0 0
    %540 = vmatmul.mubr.bf16.gmra.mrb[0].mxu0 %v262
    %v541 = vpop.f32.mrb[0].mxu0
    %v542 = vadd.f32 %v113, %v541
    %v543 = vpop.f32.mrb[0].mxu0
    %v544 = vpop.f32.mrb[0].mxu0
    %v545 = vadd.f32 %v113, %v544
    %v546 = vpop.f32.mrb[0].mxu0
    %547 = vmatprep.mubr.bf16.mxu0 0
    %548 = vmatmul.mubr.bf16.gmra.mrb[0].mxu0 %v263
    %v549 = vpop.f32.mrb[0].mxu0
    %v550 = vadd.f32 %v113, %v549
    %v551 = vpop.f32.mrb[0].mxu0
    %v552 = vpop.f32.mrb[0].mxu0
    %v553 = vadd.f32 %v113, %v552
    %v554 = vpop.f32.mrb[0].mxu0
    %555 = vmatprep.mubr.bf16.mxu0 0
    %556 = vmatmul.mubr.bf16.gmra.mrb[0].mxu0 %v264
    %v557 = vpop.f32.mrb[0].mxu0
    %v558 = vadd.f32 %v113, %v557
    %v559 = vpop.f32.mrb[0].mxu0
    %v560 = vpop.f32.mrb[0].mxu0
    %v561 = vadd.f32 %v113, %v560
    %v562 = vpop.f32.mrb[0].mxu0
    %563 = vmatprep.mubr.bf16.mxu0 0
    %564 = vmatmul.mubr.bf16.gmra.mrb[0].mxu0 %v265
    %v565 = vpop.f32.mrb[0].mxu0
    %v566 = vadd.f32 %v113, %v565
    %v567 = vpop.f32.mrb[0].mxu0
    %v568 = vpop.f32.mrb[0].mxu0
    %v569 = vadd.f32 %v113, %v568
    %v570 = vpop.f32.mrb[0].mxu0
    %571 = vmatprep.mubr.bf16.mxu0 0
    %572 = vmatmul.mubr.bf16.gmra.mrb[0].mxu0 %v266
    %v573 = vpop.f32.mrb[0].mxu0
    %v574 = vadd.f32 %v113, %v573
    %v575 = vpop.f32.mrb[0].mxu0
    %v576 = vpop.f32.mrb[0].mxu0
    %v577 = vadd.f32 %v113, %v576
    %v578 = vpop.f32.mrb[0].mxu0
    %579 = vmatprep.mubr.bf16.mxu0 0
    %580 = vmatmul.mubr.bf16.gmra.mrb[0].mxu0 %v267
    %v581 = vpop.f32.mrb[0].mxu0
    %v582 = vadd.f32 %v113, %v581
    %v583 = vpop.f32.mrb[0].mxu0
    %v584 = vpop.f32.mrb[0].mxu0
    %v585 = vadd.f32 %v113, %v584
    %v586 = vpop.f32.mrb[0].mxu0
    %587 = vmatprep.mubr.bf16.mxu0 0
    %588 = vmatmul.mubr.bf16.gmra.mrb[0].mxu0 %v268
    %v589 = vpop.f32.mrb[0].mxu0
    %v590 = vadd.f32 %v113, %v589
    %v591 = vpop.f32.mrb[0].mxu0
    %v592 = vpop.f32.mrb[0].mxu0
    %v593 = vadd.f32 %v113, %v592
    %v594 = vpop.f32.mrb[0].mxu0
    %595 = vmatprep.mubr.bf16.mxu0 0
    %596 = vmatmul.mubr.bf16.gmra.mrb[0].mxu0 %v269
    %v597 = vpop.f32.mrb[0].mxu0
    %v598 = vadd.f32 %v113, %v597
    %v599 = vpop.f32.mrb[0].mxu0
    %v600 = vpop.f32.mrb[0].mxu0
    %v601 = vadd.f32 %v113, %v600
    %v602 = vpop.f32.mrb[0].mxu0
    %603 = vmatprep.mubr.bf16.mxu0 0
    %604 = vmatmul.mubr.bf16.gmra.mrb[0].mxu0 %v270
    %v605 = vpop.f32.mrb[0].mxu0
    %v606 = vadd.f32 %v113, %v605
    %v607 = vpop.f32.mrb[0].mxu0
    %v608 = vpop.f32.mrb[0].mxu0
    %v609 = vadd.f32 %v113, %v608
    %v610 = vpop.f32.mrb[0].mxu0
    %611 = vmatprep.mubr.bf16.mxu0 0
    %612 = vmatmul.mubr.bf16.gmra.mrb[0].mxu0 %v271
    %v613 = vpop.f32.mrb[0].mxu0
    %v614 = vadd.f32 %v113, %v613
    %v615 = vpop.f32.mrb[0].mxu0
    %v616 = vpop.f32.mrb[0].mxu0
    %v617 = vadd.f32 %v113, %v616
    %v618 = vpop.f32.mrb[0].mxu0
    %619 = vmatprep.mubr.bf16.mxu0 0
    %620 = vmatmul.mubr.bf16.gmra.mrb[0].mxu0 %v272
    %v621 = vpop.f32.mrb[0].mxu0
    %v622 = vadd.f32 %v113, %v621
    %v623 = vpop.f32.mrb[0].mxu0
    %v624 = vpop.f32.mrb[0].mxu0
    %v625 = vadd.f32 %v113, %v624
    %v626 = vpop.f32.mrb[0].mxu0
    %627 = vmatprep.mubr.bf16.mxu0 0
    %628 = vmatmul.mubr.bf16.gmra.mrb[0].mxu0 %v273
    %v629 = vpop.f32.mrb[0].mxu0
    %v630 = vadd.f32 %v113, %v629
    %v631 = vpop.f32.mrb[0].mxu0
    %v632 = vpop.f32.mrb[0].mxu0
    %v633 = vadd.f32 %v113, %v632
    %v634 = vpop.f32.mrb[0].mxu0
    %635 = vmatprep.mubr.bf16.mxu0 0
    %636 = vmatmul.mubr.bf16.gmra.mrb[0].mxu0 %v274
    %v637 = vpop.f32.mrb[0].mxu0
    %v638 = vadd.f32 %v113, %v637
    %v639 = vpop.f32.mrb[0].mxu0
    %v640 = vpop.f32.mrb[0].mxu0
    %v641 = vadd.f32 %v113, %v640
    %v642 = vpop.f32.mrb[0].mxu0
    %643 = vdwg.mxu0
    %v644 = vmax.f32 %v390, 0.0
    %v645 = vmax.f32 %v393, 0.0
    %v646 = vmax.f32 %v398, 0.0
    %v647 = vmax.f32 %v401, 0.0
    %v648 = vmax.f32 %v406, 0.0
    %v649 = vmax.f32 %v409, 0.0
    %v650 = vmax.f32 %v414, 0.0
    %v651 = vmax.f32 %v417, 0.0
    %v652 = vmax.f32 %v422, 0.0
    %v653 = vmax.f32 %v425, 0.0
    %v654 = vmax.f32 %v430, 0.0
    %v655 = vmax.f32 %v433, 0.0
    %v656 = vmax.f32 %v438, 0.0
    %v657 = vmax.f32 %v441, 0.0
    %v658 = vmax.f32 %v446, 0.0
    %v659 = vmax.f32 %v449, 0.0
    %v660 = vmax.f32 %v454, 0.0
    %v661 = vmax.f32 %v457, 0.0
    %v662 = vmax.f32 %v462, 0.0
    %v663 = vmax.f32 %v465, 0.0
    %v664 = vmax.f32 %v470, 0.0
    %v665 = vmax.f32 %v473, 0.0
    %v666 = vmax.f32 %v478, 0.0
    %v667 = vmax.f32 %v481, 0.0
    %v668 = vmax.f32 %v486, 0.0
    %v669 = vmax.f32 %v489, 0.0
    %v670 = vmax.f32 %v494, 0.0
    %v671 = vmax.f32 %v497, 0.0
    %v672 = vmax.f32 %v502, 0.0
    %v673 = vmax.f32 %v505, 0.0
    %v674 = vmax.f32 %v510, 0.0
    %v675 = vmax.f32 %v513, 0.0
    %v676 = vmax.f32 %v518, 0.0
    %v677 = vmax.f32 %v521, 0.0
    %v678 = vmax.f32 %v526, 0.0
    %v679 = vmax.f32 %v529, 0.0
    %v680 = vmax.f32 %v534, 0.0
    %v681 = vmax.f32 %v537, 0.0
    %v682 = vmax.f32 %v542, 0.0
    %v683 = vmax.f32 %v545, 0.0
    %v684 = vmax.f32 %v550, 0.0
    %v685 = vmax.f32 %v553, 0.0
    %v686 = vmax.f32 %v558, 0.0
    %v687 = vmax.f32 %v561, 0.0
    %v688 = vmax.f32 %v566, 0.0
    %v689 = vmax.f32 %v569, 0.0
    %v690 = vmax.f32 %v574, 0.0
    %v691 = vmax.f32 %v577, 0.0
    %v692 = vmax.f32 %v582, 0.0
    %v693 = vmax.f32 %v585, 0.0
    %v694 = vmax.f32 %v590, 0.0
    %v695 = vmax.f32 %v593, 0.0
    %v696 = vmax.f32 %v598, 0.0
    %v697 = vmax.f32 %v601, 0.0
    %v698 = vmax.f32 %v606, 0.0
    %v699 = vmax.f32 %v609, 0.0
    %v700 = vmax.f32 %v614, 0.0
    %v701 = vmax.f32 %v617, 0.0
    %v702 = vmax.f32 %v622, 0.0
    %v703 = vmax.f32 %v625, 0.0
    %v704 = vmax.f32 %v630, 0.0
    %v705 = vmax.f32 %v633, 0.0
    %v706 = vmax.f32 %v638, 0.0
    %v707 = vmax.f32 %v641, 0.0
    %v708 = vpack.c.bf16 %v645, %v644
    %v709 = vpack.c.bf16 %v647, %v646
    %v710 = vpack.c.bf16 %v649, %v648
    %v711 = vpack.c.bf16 %v651, %v650
    %v712 = vpack.c.bf16 %v653, %v652
    %v713 = vpack.c.bf16 %v655, %v654
    %v714 = vpack.c.bf16 %v657, %v656
    %v715 = vpack.c.bf16 %v659, %v658
    %v716 = vpack.c.bf16 %v661, %v660
    %v717 = vpack.c.bf16 %v663, %v662
    %v718 = vpack.c.bf16 %v665, %v664
    %v719 = vpack.c.bf16 %v667, %v666
    %v720 = vpack.c.bf16 %v669, %v668
    %v721 = vpack.c.bf16 %v671, %v670
    %v722 = vpack.c.bf16 %v673, %v672
    %v723 = vpack.c.bf16 %v675, %v674
    %v724 = vpack.c.bf16 %v677, %v676
    %v725 = vpack.c.bf16 %v679, %v678
    %v726 = vpack.c.bf16 %v681, %v680
    %v727 = vpack.c.bf16 %v683, %v682
    %v728 = vpack.c.bf16 %v685, %v684
    %v729 = vpack.c.bf16 %v687, %v686
    %v730 = vpack.c.bf16 %v689, %v688
    %v731 = vpack.c.bf16 %v691, %v690
    %v732 = vpack.c.bf16 %v693, %v692
    %v733 = vpack.c.bf16 %v695, %v694
    %v734 = vpack.c.bf16 %v697, %v696
    %v735 = vpack.c.bf16 %v699, %v698
    %v736 = vpack.c.bf16 %v701, %v700
    %v737 = vpack.c.bf16 %v703, %v702
    %v738 = vpack.c.bf16 %v705, %v704
    %v739 = vpack.c.bf16 %v707, %v706
    %v740 = vld [vmem:[%s3] sm:$0xf]
    %v741 = vld [vmem:[%s3 + $0x4] sm:$0xf]
    %v742 = vld [vmem:[%s3 + $0x8] sm:$0xf]
    %v743 = vld [vmem:[%s3 + $0xc] sm:$0xf]
    %v744 = vld [vmem:[%s3 + $0x10] sm:$0xf]
    %v745 = vld [vmem:[%s3 + $0x14] sm:$0xf]
    %v746 = vld [vmem:[%s3 + $0x18] sm:$0xf]
    %v747 = vld [vmem:[%s3 + $0x1c] sm:$0xf]
    %v748 = vld [vmem:[%s3 + $0x20] sm:$0xf]
    %v749 = vld [vmem:[%s3 + $0x24] sm:$0xf]
    %v750 = vld [vmem:[%s3 + $0x28] sm:$0xf]
    %v751 = vld [vmem:[%s3 + $0x2c] sm:$0xf]
    %v752 = vld [vmem:[%s3 + $0x30] sm:$0xf]
    %v753 = vld [vmem:[%s3 + $0x34] sm:$0xf]
    %v754 = vld [vmem:[%s3 + $0x38] sm:$0xf]
    %v755 = vld [vmem:[%s3 + $0x3c] sm:$0xf]
    %v756 = vld [vmem:[%s4] sm:$0x1]
    %v758 = vlaneseq
    %v759 = vshrl.u32 %v758, 7
    %v760 = vsub.s32 0, %v759
    %v761 = vrot.slane %v756, %v760
    %v779 = vunpack.c.l.b16 %v740
    %v780 = vunpack.c.l.b16 %v741
    %v781 = vunpack.c.l.b16 %v742
    %v782 = vunpack.c.l.b16 %v743
    %v783 = vunpack.c.l.b16 %v744
    %v784 = vunpack.c.l.b16 %v745
    %v785 = vunpack.c.l.b16 %v746
    %v786 = vunpack.c.l.b16 %v747
    %v787 = vunpack.c.l.b16 %v748
    %v788 = vunpack.c.l.b16 %v749
    %v789 = vunpack.c.l.b16 %v750
    %v790 = vunpack.c.l.b16 %v751
    %v791 = vunpack.c.l.b16 %v752
    %v792 = vunpack.c.l.b16 %v753
    %v793 = vunpack.c.l.b16 %v754
    %v794 = vunpack.c.l.b16 %v755
    %v795 = vpack.c.b16 %v780, %v779
    %v796 = vpack.c.b16 %v782, %v781
    %v797 = vpack.c.b16 %v784, %v783
    %v798 = vpack.c.b16 %v786, %v785
    %v799 = vpack.c.b16 %v788, %v787
    %v800 = vpack.c.b16 %v790, %v789
    %v801 = vpack.c.b16 %v792, %v791
    %v802 = vpack.c.b16 %v794, %v793
    %811 = vmatprep.subr.bf16.mxu0 0
    %812 = vmatpush1.bf16.msra.mxu0 %v795
    %813 = vmatprep.subr.bf16.mxu0 0
    %814 = vmatpush1.bf16.msra.mxu0 %v796
    %815 = vmatprep.subr.bf16.mxu0 0
    %816 = vmatpush1.bf16.msra.mxu0 %v797
    %817 = vmatprep.subr.bf16.mxu0 0
    %818 = vmatpush1.bf16.msra.mxu0 %v798
    %819 = vmatprep.subr.bf16.mxu0 0
    %820 = vmatpush1.bf16.msra.mxu0 %v799
    %821 = vmatprep.subr.bf16.mxu0 0
    %822 = vmatpush1.bf16.msra.mxu0 %v800
    %823 = vmatprep.subr.bf16.mxu0 0
    %824 = vmatpush1.bf16.msra.mxu0 %v801
    %825 = vmatprep.subr.bf16.mxu0 0
    %826 = vmatpush1.bf16.msra.mxu0 %v802
    %827 = vmatprep.subr.bf16.mxu0 0
    %828 = vmatpush1.bf16.msra.mxu0 0
    %829 = vmatprep.subr.bf16.mxu0 0
    %830 = vmatpush1.bf16.msra.mxu0 0
    %831 = vmatprep.subr.bf16.mxu0 0
    %832 = vmatpush1.bf16.msra.mxu0 0
    %833 = vmatprep.subr.bf16.mxu0 0
    %834 = vmatpush1.bf16.msra.mxu0 0
    %835 = vmatprep.subr.bf16.mxu0 0
    %836 = vmatpush1.bf16.msra.mxu0 0
    %837 = vmatprep.subr.bf16.mxu0 0
    %838 = vmatpush1.bf16.msra.mxu0 0
    %839 = vmatprep.subr.bf16.mxu0 0
    %840 = vmatpush1.bf16.msra.mxu0 0
    %841 = vmatprep.subr.bf16.mxu0 0
    %842 = vmatpush1.bf16.msra.mxu0 0
    %843 = vmatprep.mubr.bf16.mxu0 0
    %844 = vmatmul.mubr.bf16.gmra.mrb[0].mxu0 %v708
    %v845 = vpop.f32.mrb[0].mxu0
    %v846 = vadd.f32 %v761, %v845
    %v847 = vpop.f32.mrb[0].mxu0
    %v848 = vpop.f32.mrb[0].mxu0
    %v849 = vadd.f32 %v761, %v848
    %v850 = vpop.f32.mrb[0].mxu0
    %851 = vmatprep.mubr.bf16.mxu0 0
    %852 = vmatmul.mubr.bf16.gmra.mrb[0].mxu0 %v709
    %v853 = vpop.f32.mrb[0].mxu0
    %v854 = vadd.f32 %v761, %v853
    %v855 = vpop.f32.mrb[0].mxu0
    %v856 = vpop.f32.mrb[0].mxu0
    %v857 = vadd.f32 %v761, %v856
    %v858 = vpop.f32.mrb[0].mxu0
    %859 = vmatprep.mubr.bf16.mxu0 0
    %860 = vmatmul.mubr.bf16.gmra.mrb[0].mxu0 %v710
    %v861 = vpop.f32.mrb[0].mxu0
    %v862 = vadd.f32 %v761, %v861
    %v863 = vpop.f32.mrb[0].mxu0
    %v864 = vpop.f32.mrb[0].mxu0
    %v865 = vadd.f32 %v761, %v864
    %v866 = vpop.f32.mrb[0].mxu0
    %867 = vmatprep.mubr.bf16.mxu0 0
    %868 = vmatmul.mubr.bf16.gmra.mrb[0].mxu0 %v711
    %v869 = vpop.f32.mrb[0].mxu0
    %v870 = vadd.f32 %v761, %v869
    %v871 = vpop.f32.mrb[0].mxu0
    %v872 = vpop.f32.mrb[0].mxu0
    %v873 = vadd.f32 %v761, %v872
    %v874 = vpop.f32.mrb[0].mxu0
    %875 = vmatprep.mubr.bf16.mxu0 0
    %876 = vmatmul.mubr.bf16.gmra.mrb[0].mxu0 %v712
    %v877 = vpop.f32.mrb[0].mxu0
    %v878 = vadd.f32 %v761, %v877
    %v879 = vpop.f32.mrb[0].mxu0
    %v880 = vpop.f32.mrb[0].mxu0
    %v881 = vadd.f32 %v761, %v880
    %v882 = vpop.f32.mrb[0].mxu0
    %883 = vmatprep.mubr.bf16.mxu0 0
    %884 = vmatmul.mubr.bf16.gmra.mrb[0].mxu0 %v713
    %v885 = vpop.f32.mrb[0].mxu0
    %v886 = vadd.f32 %v761, %v885
    %v887 = vpop.f32.mrb[0].mxu0
    %v888 = vpop.f32.mrb[0].mxu0
    %v889 = vadd.f32 %v761, %v888
    %v890 = vpop.f32.mrb[0].mxu0
    %891 = vmatprep.mubr.bf16.mxu0 0
    %892 = vmatmul.mubr.bf16.gmra.mrb[0].mxu0 %v714
    %v893 = vpop.f32.mrb[0].mxu0
    %v894 = vadd.f32 %v761, %v893
    %v895 = vpop.f32.mrb[0].mxu0
    %v896 = vpop.f32.mrb[0].mxu0
    %v897 = vadd.f32 %v761, %v896
    %v898 = vpop.f32.mrb[0].mxu0
    %899 = vmatprep.mubr.bf16.mxu0 0
    %900 = vmatmul.mubr.bf16.gmra.mrb[0].mxu0 %v715
    %v901 = vpop.f32.mrb[0].mxu0
    %v902 = vadd.f32 %v761, %v901
    %v903 = vpop.f32.mrb[0].mxu0
    %v904 = vpop.f32.mrb[0].mxu0
    %v905 = vadd.f32 %v761, %v904
    %v906 = vpop.f32.mrb[0].mxu0
    %907 = vmatprep.mubr.bf16.mxu0 0
    %908 = vmatmul.mubr.bf16.gmra.mrb[0].mxu0 %v716
    %v909 = vpop.f32.mrb[0].mxu0
    %v910 = vadd.f32 %v761, %v909
    %v911 = vpop.f32.mrb[0].mxu0
    %v912 = vpop.f32.mrb[0].mxu0
    %v913 = vadd.f32 %v761, %v912
    %v914 = vpop.f32.mrb[0].mxu0
    %915 = vmatprep.mubr.bf16.mxu0 0
    %916 = vmatmul.mubr.bf16.gmra.mrb[0].mxu0 %v717
    %v917 = vpop.f32.mrb[0].mxu0
    %v918 = vadd.f32 %v761, %v917
    %v919 = vpop.f32.mrb[0].mxu0
    %v920 = vpop.f32.mrb[0].mxu0
    %v921 = vadd.f32 %v761, %v920
    %v922 = vpop.f32.mrb[0].mxu0
    %923 = vmatprep.mubr.bf16.mxu0 0
    %924 = vmatmul.mubr.bf16.gmra.mrb[0].mxu0 %v718
    %v925 = vpop.f32.mrb[0].mxu0
    %v926 = vadd.f32 %v761, %v925
    %v927 = vpop.f32.mrb[0].mxu0
    %v928 = vpop.f32.mrb[0].mxu0
    %v929 = vadd.f32 %v761, %v928
    %v930 = vpop.f32.mrb[0].mxu0
    %931 = vmatprep.mubr.bf16.mxu0 0
    %932 = vmatmul.mubr.bf16.gmra.mrb[0].mxu0 %v719
    %v933 = vpop.f32.mrb[0].mxu0
    %v934 = vadd.f32 %v761, %v933
    %v935 = vpop.f32.mrb[0].mxu0
    %v936 = vpop.f32.mrb[0].mxu0
    %v937 = vadd.f32 %v761, %v936
    %v938 = vpop.f32.mrb[0].mxu0
    %939 = vmatprep.mubr.bf16.mxu0 0
    %940 = vmatmul.mubr.bf16.gmra.mrb[0].mxu0 %v720
    %v941 = vpop.f32.mrb[0].mxu0
    %v942 = vadd.f32 %v761, %v941
    %v943 = vpop.f32.mrb[0].mxu0
    %v944 = vpop.f32.mrb[0].mxu0
    %v945 = vadd.f32 %v761, %v944
    %v946 = vpop.f32.mrb[0].mxu0
    %947 = vmatprep.mubr.bf16.mxu0 0
    %948 = vmatmul.mubr.bf16.gmra.mrb[0].mxu0 %v721
    %v949 = vpop.f32.mrb[0].mxu0
    %v950 = vadd.f32 %v761, %v949
    %v951 = vpop.f32.mrb[0].mxu0
    %v952 = vpop.f32.mrb[0].mxu0
    %v953 = vadd.f32 %v761, %v952
    %v954 = vpop.f32.mrb[0].mxu0
    %955 = vmatprep.mubr.bf16.mxu0 0
    %956 = vmatmul.mubr.bf16.gmra.mrb[0].mxu0 %v722
    %v957 = vpop.f32.mrb[0].mxu0
    %v958 = vadd.f32 %v761, %v957
    %v959 = vpop.f32.mrb[0].mxu0
    %v960 = vpop.f32.mrb[0].mxu0
    %v961 = vadd.f32 %v761, %v960
    %v962 = vpop.f32.mrb[0].mxu0
    %963 = vmatprep.mubr.bf16.mxu0 0
    %964 = vmatmul.mubr.bf16.gmra.mrb[0].mxu0 %v723
    %v965 = vpop.f32.mrb[0].mxu0
    %v966 = vadd.f32 %v761, %v965
    %v967 = vpop.f32.mrb[0].mxu0
    %v968 = vpop.f32.mrb[0].mxu0
    %v969 = vadd.f32 %v761, %v968
    %v970 = vpop.f32.mrb[0].mxu0
    %971 = vmatprep.mubr.bf16.mxu0 0
    %972 = vmatmul.mubr.bf16.gmra.mrb[0].mxu0 %v724
    %v973 = vpop.f32.mrb[0].mxu0
    %v974 = vadd.f32 %v761, %v973
    %v975 = vpop.f32.mrb[0].mxu0
    %v976 = vpop.f32.mrb[0].mxu0
    %v977 = vadd.f32 %v761, %v976
    %v978 = vpop.f32.mrb[0].mxu0
    %979 = vmatprep.mubr.bf16.mxu0 0
    %980 = vmatmul.mubr.bf16.gmra.mrb[0].mxu0 %v725
    %v981 = vpop.f32.mrb[0].mxu0
    %v982 = vadd.f32 %v761, %v981
    %v983 = vpop.f32.mrb[0].mxu0
    %v984 = vpop.f32.mrb[0].mxu0
    %v985 = vadd.f32 %v761, %v984
    %v986 = vpop.f32.mrb[0].mxu0
    %987 = vmatprep.mubr.bf16.mxu0 0
    %988 = vmatmul.mubr.bf16.gmra.mrb[0].mxu0 %v726
    %v989 = vpop.f32.mrb[0].mxu0
    %v990 = vadd.f32 %v761, %v989
    %v991 = vpop.f32.mrb[0].mxu0
    %v992 = vpop.f32.mrb[0].mxu0
    %v993 = vadd.f32 %v761, %v992
    %v994 = vpop.f32.mrb[0].mxu0
    %995 = vmatprep.mubr.bf16.mxu0 0
    %996 = vmatmul.mubr.bf16.gmra.mrb[0].mxu0 %v727
    %v997 = vpop.f32.mrb[0].mxu0
    %v998 = vadd.f32 %v761, %v997
    %v999 = vpop.f32.mrb[0].mxu0
    %v1000 = vpop.f32.mrb[0].mxu0
    %v1001 = vadd.f32 %v761, %v1000
    %v1002 = vpop.f32.mrb[0].mxu0
    %1003 = vmatprep.mubr.bf16.mxu0 0
    %1004 = vmatmul.mubr.bf16.gmra.mrb[0].mxu0 %v728
    %v1005 = vpop.f32.mrb[0].mxu0
    %v1006 = vadd.f32 %v761, %v1005
    %v1007 = vpop.f32.mrb[0].mxu0
    %v1008 = vpop.f32.mrb[0].mxu0
    %v1009 = vadd.f32 %v761, %v1008
    %v1010 = vpop.f32.mrb[0].mxu0
    %1011 = vmatprep.mubr.bf16.mxu0 0
    %1012 = vmatmul.mubr.bf16.gmra.mrb[0].mxu0 %v729
    %v1013 = vpop.f32.mrb[0].mxu0
    %v1014 = vadd.f32 %v761, %v1013
    %v1015 = vpop.f32.mrb[0].mxu0
    %v1016 = vpop.f32.mrb[0].mxu0
    %v1017 = vadd.f32 %v761, %v1016
    %v1018 = vpop.f32.mrb[0].mxu0
    %1019 = vmatprep.mubr.bf16.mxu0 0
    %1020 = vmatmul.mubr.bf16.gmra.mrb[0].mxu0 %v730
    %v1021 = vpop.f32.mrb[0].mxu0
    %v1022 = vadd.f32 %v761, %v1021
    %v1023 = vpop.f32.mrb[0].mxu0
    %v1024 = vpop.f32.mrb[0].mxu0
    %v1025 = vadd.f32 %v761, %v1024
    %v1026 = vpop.f32.mrb[0].mxu0
    %1027 = vmatprep.mubr.bf16.mxu0 0
    %1028 = vmatmul.mubr.bf16.gmra.mrb[0].mxu0 %v731
    %v1029 = vpop.f32.mrb[0].mxu0
    %v1030 = vadd.f32 %v761, %v1029
    %v1031 = vpop.f32.mrb[0].mxu0
    %v1032 = vpop.f32.mrb[0].mxu0
    %v1033 = vadd.f32 %v761, %v1032
    %v1034 = vpop.f32.mrb[0].mxu0
    %1035 = vmatprep.mubr.bf16.mxu0 0
    %1036 = vmatmul.mubr.bf16.gmra.mrb[0].mxu0 %v732
    %v1037 = vpop.f32.mrb[0].mxu0
    %v1038 = vadd.f32 %v761, %v1037
    %v1039 = vpop.f32.mrb[0].mxu0
    %v1040 = vpop.f32.mrb[0].mxu0
    %v1041 = vadd.f32 %v761, %v1040
    %v1042 = vpop.f32.mrb[0].mxu0
    %1043 = vmatprep.mubr.bf16.mxu0 0
    %1044 = vmatmul.mubr.bf16.gmra.mrb[0].mxu0 %v733
    %v1045 = vpop.f32.mrb[0].mxu0
    %v1046 = vadd.f32 %v761, %v1045
    %v1047 = vpop.f32.mrb[0].mxu0
    %v1048 = vpop.f32.mrb[0].mxu0
    %v1049 = vadd.f32 %v761, %v1048
    %v1050 = vpop.f32.mrb[0].mxu0
    %1051 = vmatprep.mubr.bf16.mxu0 0
    %1052 = vmatmul.mubr.bf16.gmra.mrb[0].mxu0 %v734
    %v1053 = vpop.f32.mrb[0].mxu0
    %v1054 = vadd.f32 %v761, %v1053
    %v1055 = vpop.f32.mrb[0].mxu0
    %v1056 = vpop.f32.mrb[0].mxu0
    %v1057 = vadd.f32 %v761, %v1056
    %v1058 = vpop.f32.mrb[0].mxu0
    %1059 = vmatprep.mubr.bf16.mxu0 0
    %1060 = vmatmul.mubr.bf16.gmra.mrb[0].mxu0 %v735
    %v1061 = vpop.f32.mrb[0].mxu0
    %v1062 = vadd.f32 %v761, %v1061
    %v1063 = vpop.f32.mrb[0].mxu0
    %v1064 = vpop.f32.mrb[0].mxu0
    %v1065 = vadd.f32 %v761, %v1064
    %v1066 = vpop.f32.mrb[0].mxu0
    %1067 = vmatprep.mubr.bf16.mxu0 0
    %1068 = vmatmul.mubr.bf16.gmra.mrb[0].mxu0 %v736
    %v1069 = vpop.f32.mrb[0].mxu0
    %v1070 = vadd.f32 %v761, %v1069
    %v1071 = vpop.f32.mrb[0].mxu0
    %v1072 = vpop.f32.mrb[0].mxu0
    %v1073 = vadd.f32 %v761, %v1072
    %v1074 = vpop.f32.mrb[0].mxu0
    %1075 = vmatprep.mubr.bf16.mxu0 0
    %1076 = vmatmul.mubr.bf16.gmra.mrb[0].mxu0 %v737
    %v1077 = vpop.f32.mrb[0].mxu0
    %v1078 = vadd.f32 %v761, %v1077
    %v1079 = vpop.f32.mrb[0].mxu0
    %v1080 = vpop.f32.mrb[0].mxu0
    %v1081 = vadd.f32 %v761, %v1080
    %v1082 = vpop.f32.mrb[0].mxu0
    %1083 = vmatprep.mubr.bf16.mxu0 0
    %1084 = vmatmul.mubr.bf16.gmra.mrb[0].mxu0 %v738
    %v1085 = vpop.f32.mrb[0].mxu0
    %v1086 = vadd.f32 %v761, %v1085
    %v1087 = vpop.f32.mrb[0].mxu0
    %v1088 = vpop.f32.mrb[0].mxu0
    %v1089 = vadd.f32 %v761, %v1088
    %v1090 = vpop.f32.mrb[0].mxu0
    %1091 = vmatprep.mubr.bf16.mxu0 0
    %1092 = vmatmul.mubr.bf16.gmra.mrb[0].mxu0 %v739
    %v1093 = vpop.f32.mrb[0].mxu0
    %v1094 = vadd.f32 %v761, %v1093
    %v1095 = vpop.f32.mrb[0].mxu0
    %v1096 = vpop.f32.mrb[0].mxu0
    %v1097 = vadd.f32 %v761, %v1096
    %v1098 = vpop.f32.mrb[0].mxu0
    %1099 = vdwg.mxu0
    %v1100 = vmax.f32 %v846, 0.0
    %v1101 = vmax.f32 %v849, 0.0
    %v1102 = vmax.f32 %v854, 0.0
    %v1103 = vmax.f32 %v857, 0.0
    %v1104 = vmax.f32 %v862, 0.0
    %v1105 = vmax.f32 %v865, 0.0
    %v1106 = vmax.f32 %v870, 0.0
    %v1107 = vmax.f32 %v873, 0.0
    %v1108 = vmax.f32 %v878, 0.0
    %v1109 = vmax.f32 %v881, 0.0
    %v1110 = vmax.f32 %v886, 0.0
    %v1111 = vmax.f32 %v889, 0.0
    %v1112 = vmax.f32 %v894, 0.0
    %v1113 = vmax.f32 %v897, 0.0
    %v1114 = vmax.f32 %v902, 0.0
    %v1115 = vmax.f32 %v905, 0.0
    %v1116 = vmax.f32 %v910, 0.0
    %v1117 = vmax.f32 %v913, 0.0
    %v1118 = vmax.f32 %v918, 0.0
    %v1119 = vmax.f32 %v921, 0.0
    %v1120 = vmax.f32 %v926, 0.0
    %v1121 = vmax.f32 %v929, 0.0
    %v1122 = vmax.f32 %v934, 0.0
    %v1123 = vmax.f32 %v937, 0.0
    %v1124 = vmax.f32 %v942, 0.0
    %v1125 = vmax.f32 %v945, 0.0
    %v1126 = vmax.f32 %v950, 0.0
    %v1127 = vmax.f32 %v953, 0.0
    %v1128 = vmax.f32 %v958, 0.0
    %v1129 = vmax.f32 %v961, 0.0
    %v1130 = vmax.f32 %v966, 0.0
    %v1131 = vmax.f32 %v969, 0.0
    %v1132 = vmax.f32 %v974, 0.0
    %v1133 = vmax.f32 %v977, 0.0
    %v1134 = vmax.f32 %v982, 0.0
    %v1135 = vmax.f32 %v985, 0.0
    %v1136 = vmax.f32 %v990, 0.0
    %v1137 = vmax.f32 %v993, 0.0
    %v1138 = vmax.f32 %v998, 0.0
    %v1139 = vmax.f32 %v1001, 0.0
    %v1140 = vmax.f32 %v1006, 0.0
    %v1141 = vmax.f32 %v1009, 0.0
    %v1142 = vmax.f32 %v1014, 0.0
    %v1143 = vmax.f32 %v1017, 0.0
    %v1144 = vmax.f32 %v1022, 0.0
    %v1145 = vmax.f32 %v1025, 0.0
    %v1146 = vmax.f32 %v1030, 0.0
    %v1147 = vmax.f32 %v1033, 0.0
    %v1148 = vmax.f32 %v1038, 0.0
    %v1149 = vmax.f32 %v1041, 0.0
    %v1150 = vmax.f32 %v1046, 0.0
    %v1151 = vmax.f32 %v1049, 0.0
    %v1152 = vmax.f32 %v1054, 0.0
    %v1153 = vmax.f32 %v1057, 0.0
    %v1154 = vmax.f32 %v1062, 0.0
    %v1155 = vmax.f32 %v1065, 0.0
    %v1156 = vmax.f32 %v1070, 0.0
    %v1157 = vmax.f32 %v1073, 0.0
    %v1158 = vmax.f32 %v1078, 0.0
    %v1159 = vmax.f32 %v1081, 0.0
    %v1160 = vmax.f32 %v1086, 0.0
    %v1161 = vmax.f32 %v1089, 0.0
    %v1162 = vmax.f32 %v1094, 0.0
    %v1163 = vmax.f32 %v1097, 0.0
    %v1164 = vpack.c.bf16 %v1101, %v1100
    %v1165 = vpack.c.bf16 %v1103, %v1102
    %v1166 = vpack.c.bf16 %v1105, %v1104
    %v1167 = vpack.c.bf16 %v1107, %v1106
    %v1168 = vpack.c.bf16 %v1109, %v1108
    %v1169 = vpack.c.bf16 %v1111, %v1110
    %v1170 = vpack.c.bf16 %v1113, %v1112
    %v1171 = vpack.c.bf16 %v1115, %v1114
    %v1172 = vpack.c.bf16 %v1117, %v1116
    %v1173 = vpack.c.bf16 %v1119, %v1118
    %v1174 = vpack.c.bf16 %v1121, %v1120
    %v1175 = vpack.c.bf16 %v1123, %v1122
    %v1176 = vpack.c.bf16 %v1125, %v1124
    %v1177 = vpack.c.bf16 %v1127, %v1126
    %v1178 = vpack.c.bf16 %v1129, %v1128
    %v1179 = vpack.c.bf16 %v1131, %v1130
    %v1180 = vpack.c.bf16 %v1133, %v1132
    %v1181 = vpack.c.bf16 %v1135, %v1134
    %v1182 = vpack.c.bf16 %v1137, %v1136
    %v1183 = vpack.c.bf16 %v1139, %v1138
    %v1184 = vpack.c.bf16 %v1141, %v1140
    %v1185 = vpack.c.bf16 %v1143, %v1142
    %v1186 = vpack.c.bf16 %v1145, %v1144
    %v1187 = vpack.c.bf16 %v1147, %v1146
    %v1188 = vpack.c.bf16 %v1149, %v1148
    %v1189 = vpack.c.bf16 %v1151, %v1150
    %v1190 = vpack.c.bf16 %v1153, %v1152
    %v1191 = vpack.c.bf16 %v1155, %v1154
    %v1192 = vpack.c.bf16 %v1157, %v1156
    %v1193 = vpack.c.bf16 %v1159, %v1158
    %v1194 = vpack.c.bf16 %v1161, %v1160
    %v1195 = vpack.c.bf16 %v1163, %v1162
    %v1196 = vld [vmem:[%s5] sm:$0xf]
    %v1197 = vld [vmem:[%s5 + $0x4] sm:$0xf]
    %v1198 = vld [vmem:[%s5 + $0x8] sm:$0xf]
    %v1199 = vld [vmem:[%s5 + $0xc] sm:$0xf]
    %v1200 = vld [vmem:[%s5 + $0x10] sm:$0xf]
    %v1201 = vld [vmem:[%s5 + $0x14] sm:$0xf]
    %v1202 = vld [vmem:[%s5 + $0x18] sm:$0xf]
    %v1203 = vld [vmem:[%s5 + $0x1c] sm:$0xf]
    %v1204 = vld [vmem:[%s5 + $0x20] sm:$0xf]
    %v1205 = vld [vmem:[%s5 + $0x24] sm:$0xf]
    %v1206 = vld [vmem:[%s5 + $0x28] sm:$0xf]
    %v1207 = vld [vmem:[%s5 + $0x2c] sm:$0xf]
    %v1208 = vld [vmem:[%s5 + $0x30] sm:$0xf]
    %v1209 = vld [vmem:[%s5 + $0x34] sm:$0xf]
    %v1210 = vld [vmem:[%s5 + $0x38] sm:$0xf]
    %v1211 = vld [vmem:[%s5 + $0x3c] sm:$0xf]
    %v1212 = vld [vmem:[%s6] sm:$0x1]
    %v1214 = vlaneseq
    %v1215 = vshrl.u32 %v1214, 7
    %v1216 = vsub.s32 0, %v1215
    %v1217 = vrot.slane %v1212, %v1216
    %v1235 = vunpack.c.l.b16 %v1196
    %v1236 = vunpack.c.l.b16 %v1197
    %v1237 = vunpack.c.l.b16 %v1198
    %v1238 = vunpack.c.l.b16 %v1199
    %v1239 = vunpack.c.l.b16 %v1200
    %v1240 = vunpack.c.l.b16 %v1201
    %v1241 = vunpack.c.l.b16 %v1202
    %v1242 = vunpack.c.l.b16 %v1203
    %v1243 = vunpack.c.l.b16 %v1204
    %v1244 = vunpack.c.l.b16 %v1205
    %v1245 = vunpack.c.l.b16 %v1206
    %v1246 = vunpack.c.l.b16 %v1207
    %v1247 = vunpack.c.l.b16 %v1208
    %v1248 = vunpack.c.l.b16 %v1209
    %v1249 = vunpack.c.l.b16 %v1210
    %v1250 = vunpack.c.l.b16 %v1211
    %v1251 = vpack.c.b16 %v1236, %v1235
    %v1252 = vpack.c.b16 %v1238, %v1237
    %v1253 = vpack.c.b16 %v1240, %v1239
    %v1254 = vpack.c.b16 %v1242, %v1241
    %v1255 = vpack.c.b16 %v1244, %v1243
    %v1256 = vpack.c.b16 %v1246, %v1245
    %v1257 = vpack.c.b16 %v1248, %v1247
    %v1258 = vpack.c.b16 %v1250, %v1249
    %1267 = vmatprep.subr.bf16.mxu0 0
    %1268 = vmatpush1.bf16.msra.mxu0 %v1251
    %1269 = vmatprep.subr.bf16.mxu0 0
    %1270 = vmatpush1.bf16.msra.mxu0 %v1252
    %1271 = vmatprep.subr.bf16.mxu0 0
    %1272 = vmatpush1.bf16.msra.mxu0 %v1253
    %1273 = vmatprep.subr.bf16.mxu0 0
    %1274 = vmatpush1.bf16.msra.mxu0 %v1254
    %1275 = vmatprep.subr.bf16.mxu0 0
    %1276 = vmatpush1.bf16.msra.mxu0 %v1255
    %1277 = vmatprep.subr.bf16.mxu0 0
    %1278 = vmatpush1.bf16.msra.mxu0 %v1256
    %1279 = vmatprep.subr.bf16.mxu0 0
    %1280 = vmatpush1.bf16.msra.mxu0 %v1257
    %1281 = vmatprep.subr.bf16.mxu0 0
    %1282 = vmatpush1.bf16.msra.mxu0 %v1258
    %1283 = vmatprep.subr.bf16.mxu0 0
    %1284 = vmatpush1.bf16.msra.mxu0 0
    %1285 = vmatprep.subr.bf16.mxu0 0
    %1286 = vmatpush1.bf16.msra.mxu0 0
    %1287 = vmatprep.subr.bf16.mxu0 0
    %1288 = vmatpush1.bf16.msra.mxu0 0
    %1289 = vmatprep.subr.bf16.mxu0 0
    %1290 = vmatpush1.bf16.msra.mxu0 0
    %1291 = vmatprep.subr.bf16.mxu0 0
    %1292 = vmatpush1.bf16.msra.mxu0 0
    %1293 = vmatprep.subr.bf16.mxu0 0
    %1294 = vmatpush1.bf16.msra.mxu0 0
    %1295 = vmatprep.subr.bf16.mxu0 0
    %1296 = vmatpush1.bf16.msra.mxu0 0
    %1297 = vmatprep.subr.bf16.mxu0 0
    %1298 = vmatpush1.bf16.msra.mxu0 0
    %1299 = vmatprep.mubr.bf16.mxu0 0
    %1300 = vmatmul.mubr.bf16.gmra.mrb[0].mxu0 %v1164
    %v1301 = vpop.f32.mrb[0].mxu0
    %v1302 = vadd.f32 %v1217, %v1301
    %v1303 = vpop.f32.mrb[0].mxu0
    %v1304 = vpop.f32.mrb[0].mxu0
    %v1305 = vadd.f32 %v1217, %v1304
    %v1306 = vpop.f32.mrb[0].mxu0
    %1307 = vmatprep.mubr.bf16.mxu0 0
    %1308 = vmatmul.mubr.bf16.gmra.mrb[0].mxu0 %v1165
    %v1309 = vpop.f32.mrb[0].mxu0
    %v1310 = vadd.f32 %v1217, %v1309
    %v1311 = vpop.f32.mrb[0].mxu0
    %v1312 = vpop.f32.mrb[0].mxu0
    %v1313 = vadd.f32 %v1217, %v1312
    %v1314 = vpop.f32.mrb[0].mxu0
    %1315 = vmatprep.mubr.bf16.mxu0 0
    %1316 = vmatmul.mubr.bf16.gmra.mrb[0].mxu0 %v1166
    %v1317 = vpop.f32.mrb[0].mxu0
    %v1318 = vadd.f32 %v1217, %v1317
    %v1319 = vpop.f32.mrb[0].mxu0
    %v1320 = vpop.f32.mrb[0].mxu0
    %v1321 = vadd.f32 %v1217, %v1320
    %v1322 = vpop.f32.mrb[0].mxu0
    %1323 = vmatprep.mubr.bf16.mxu0 0
    %1324 = vmatmul.mubr.bf16.gmra.mrb[0].mxu0 %v1167
    %v1325 = vpop.f32.mrb[0].mxu0
    %v1326 = vadd.f32 %v1217, %v1325
    %v1327 = vpop.f32.mrb[0].mxu0
    %v1328 = vpop.f32.mrb[0].mxu0
    %v1329 = vadd.f32 %v1217, %v1328
    %v1330 = vpop.f32.mrb[0].mxu0
    %1331 = vmatprep.mubr.bf16.mxu0 0
    %1332 = vmatmul.mubr.bf16.gmra.mrb[0].mxu0 %v1168
    %v1333 = vpop.f32.mrb[0].mxu0
    %v1334 = vadd.f32 %v1217, %v1333
    %v1335 = vpop.f32.mrb[0].mxu0
    %v1336 = vpop.f32.mrb[0].mxu0
    %v1337 = vadd.f32 %v1217, %v1336
    %v1338 = vpop.f32.mrb[0].mxu0
    %1339 = vmatprep.mubr.bf16.mxu0 0
    %1340 = vmatmul.mubr.bf16.gmra.mrb[0].mxu0 %v1169
    %v1341 = vpop.f32.mrb[0].mxu0
    %v1342 = vadd.f32 %v1217, %v1341
    %v1343 = vpop.f32.mrb[0].mxu0
    %v1344 = vpop.f32.mrb[0].mxu0
    %v1345 = vadd.f32 %v1217, %v1344
    %v1346 = vpop.f32.mrb[0].mxu0
    %1347 = vmatprep.mubr.bf16.mxu0 0
    %1348 = vmatmul.mubr.bf16.gmra.mrb[0].mxu0 %v1170
    %v1349 = vpop.f32.mrb[0].mxu0
    %v1350 = vadd.f32 %v1217, %v1349
    %v1351 = vpop.f32.mrb[0].mxu0
    %v1352 = vpop.f32.mrb[0].mxu0
    %v1353 = vadd.f32 %v1217, %v1352
    %v1354 = vpop.f32.mrb[0].mxu0
    %1355 = vmatprep.mubr.bf16.mxu0 0
    %1356 = vmatmul.mubr.bf16.gmra.mrb[0].mxu0 %v1171
    %v1357 = vpop.f32.mrb[0].mxu0
    %v1358 = vadd.f32 %v1217, %v1357
    %v1359 = vpop.f32.mrb[0].mxu0
    %v1360 = vpop.f32.mrb[0].mxu0
    %v1361 = vadd.f32 %v1217, %v1360
    %v1362 = vpop.f32.mrb[0].mxu0
    %1363 = vmatprep.mubr.bf16.mxu0 0
    %1364 = vmatmul.mubr.bf16.gmra.mrb[0].mxu0 %v1172
    %v1365 = vpop.f32.mrb[0].mxu0
    %v1366 = vadd.f32 %v1217, %v1365
    %v1367 = vpop.f32.mrb[0].mxu0
    %v1368 = vpop.f32.mrb[0].mxu0
    %v1369 = vadd.f32 %v1217, %v1368
    %v1370 = vpop.f32.mrb[0].mxu0
    %1371 = vmatprep.mubr.bf16.mxu0 0
    %1372 = vmatmul.mubr.bf16.gmra.mrb[0].mxu0 %v1173
    %v1373 = vpop.f32.mrb[0].mxu0
    %v1374 = vadd.f32 %v1217, %v1373
    %v1375 = vpop.f32.mrb[0].mxu0
    %v1376 = vpop.f32.mrb[0].mxu0
    %v1377 = vadd.f32 %v1217, %v1376
    %v1378 = vpop.f32.mrb[0].mxu0
    %1379 = vmatprep.mubr.bf16.mxu0 0
    %1380 = vmatmul.mubr.bf16.gmra.mrb[0].mxu0 %v1174
    %v1381 = vpop.f32.mrb[0].mxu0
    %v1382 = vadd.f32 %v1217, %v1381
    %v1383 = vpop.f32.mrb[0].mxu0
    %v1384 = vpop.f32.mrb[0].mxu0
    %v1385 = vadd.f32 %v1217, %v1384
    %v1386 = vpop.f32.mrb[0].mxu0
    %1387 = vmatprep.mubr.bf16.mxu0 0
    %1388 = vmatmul.mubr.bf16.gmra.mrb[0].mxu0 %v1175
    %v1389 = vpop.f32.mrb[0].mxu0
    %v1390 = vadd.f32 %v1217, %v1389
    %v1391 = vpop.f32.mrb[0].mxu0
    %v1392 = vpop.f32.mrb[0].mxu0
    %v1393 = vadd.f32 %v1217, %v1392
    %v1394 = vpop.f32.mrb[0].mxu0
    %1395 = vmatprep.mubr.bf16.mxu0 0
    %1396 = vmatmul.mubr.bf16.gmra.mrb[0].mxu0 %v1176
    %v1397 = vpop.f32.mrb[0].mxu0
    %v1398 = vadd.f32 %v1217, %v1397
    %v1399 = vpop.f32.mrb[0].mxu0
    %v1400 = vpop.f32.mrb[0].mxu0
    %v1401 = vadd.f32 %v1217, %v1400
    %v1402 = vpop.f32.mrb[0].mxu0
    %1403 = vmatprep.mubr.bf16.mxu0 0
    %1404 = vmatmul.mubr.bf16.gmra.mrb[0].mxu0 %v1177
    %v1405 = vpop.f32.mrb[0].mxu0
    %v1406 = vadd.f32 %v1217, %v1405
    %v1407 = vpop.f32.mrb[0].mxu0
    %v1408 = vpop.f32.mrb[0].mxu0
    %v1409 = vadd.f32 %v1217, %v1408
    %v1410 = vpop.f32.mrb[0].mxu0
    %1411 = vmatprep.mubr.bf16.mxu0 0
    %1412 = vmatmul.mubr.bf16.gmra.mrb[0].mxu0 %v1178
    %v1413 = vpop.f32.mrb[0].mxu0
    %v1414 = vadd.f32 %v1217, %v1413
    %v1415 = vpop.f32.mrb[0].mxu0
    %v1416 = vpop.f32.mrb[0].mxu0
    %v1417 = vadd.f32 %v1217, %v1416
    %v1418 = vpop.f32.mrb[0].mxu0
    %1419 = vmatprep.mubr.bf16.mxu0 0
    %1420 = vmatmul.mubr.bf16.gmra.mrb[0].mxu0 %v1179
    %v1421 = vpop.f32.mrb[0].mxu0
    %v1422 = vadd.f32 %v1217, %v1421
    %v1423 = vpop.f32.mrb[0].mxu0
    %v1424 = vpop.f32.mrb[0].mxu0
    %v1425 = vadd.f32 %v1217, %v1424
    %v1426 = vpop.f32.mrb[0].mxu0
    %1427 = vmatprep.mubr.bf16.mxu0 0
    %1428 = vmatmul.mubr.bf16.gmra.mrb[0].mxu0 %v1180
    %v1429 = vpop.f32.mrb[0].mxu0
    %v1430 = vadd.f32 %v1217, %v1429
    %v1431 = vpop.f32.mrb[0].mxu0
    %v1432 = vpop.f32.mrb[0].mxu0
    %v1433 = vadd.f32 %v1217, %v1432
    %v1434 = vpop.f32.mrb[0].mxu0
    %1435 = vmatprep.mubr.bf16.mxu0 0
    %1436 = vmatmul.mubr.bf16.gmra.mrb[0].mxu0 %v1181
    %v1437 = vpop.f32.mrb[0].mxu0
    %v1438 = vadd.f32 %v1217, %v1437
    %v1439 = vpop.f32.mrb[0].mxu0
    %v1440 = vpop.f32.mrb[0].mxu0
    %v1441 = vadd.f32 %v1217, %v1440
    %v1442 = vpop.f32.mrb[0].mxu0
    %1443 = vmatprep.mubr.bf16.mxu0 0
    %1444 = vmatmul.mubr.bf16.gmra.mrb[0].mxu0 %v1182
    %v1445 = vpop.f32.mrb[0].mxu0
    %v1446 = vadd.f32 %v1217, %v1445
    %v1447 = vpop.f32.mrb[0].mxu0
    %v1448 = vpop.f32.mrb[0].mxu0
    %v1449 = vadd.f32 %v1217, %v1448
    %v1450 = vpop.f32.mrb[0].mxu0
    %1451 = vmatprep.mubr.bf16.mxu0 0
    %1452 = vmatmul.mubr.bf16.gmra.mrb[0].mxu0 %v1183
    %v1453 = vpop.f32.mrb[0].mxu0
    %v1454 = vadd.f32 %v1217, %v1453
    %v1455 = vpop.f32.mrb[0].mxu0
    %v1456 = vpop.f32.mrb[0].mxu0
    %v1457 = vadd.f32 %v1217, %v1456
    %v1458 = vpop.f32.mrb[0].mxu0
    %1459 = vmatprep.mubr.bf16.mxu0 0
    %1460 = vmatmul.mubr.bf16.gmra.mrb[0].mxu0 %v1184
    %v1461 = vpop.f32.mrb[0].mxu0
    %v1462 = vadd.f32 %v1217, %v1461
    %v1463 = vpop.f32.mrb[0].mxu0
    %v1464 = vpop.f32.mrb[0].mxu0
    %v1465 = vadd.f32 %v1217, %v1464
    %v1466 = vpop.f32.mrb[0].mxu0
    %1467 = vmatprep.mubr.bf16.mxu0 0
    %1468 = vmatmul.mubr.bf16.gmra.mrb[0].mxu0 %v1185
    %v1469 = vpop.f32.mrb[0].mxu0
    %v1470 = vadd.f32 %v1217, %v1469
    %v1471 = vpop.f32.mrb[0].mxu0
    %v1472 = vpop.f32.mrb[0].mxu0
    %v1473 = vadd.f32 %v1217, %v1472
    %v1474 = vpop.f32.mrb[0].mxu0
    %1475 = vmatprep.mubr.bf16.mxu0 0
    %1476 = vmatmul.mubr.bf16.gmra.mrb[0].mxu0 %v1186
    %v1477 = vpop.f32.mrb[0].mxu0
    %v1478 = vadd.f32 %v1217, %v1477
    %v1479 = vpop.f32.mrb[0].mxu0
    %v1480 = vpop.f32.mrb[0].mxu0
    %v1481 = vadd.f32 %v1217, %v1480
    %v1482 = vpop.f32.mrb[0].mxu0
    %1483 = vmatprep.mubr.bf16.mxu0 0
    %1484 = vmatmul.mubr.bf16.gmra.mrb[0].mxu0 %v1187
    %v1485 = vpop.f32.mrb[0].mxu0
    %v1486 = vadd.f32 %v1217, %v1485
    %v1487 = vpop.f32.mrb[0].mxu0
    %v1488 = vpop.f32.mrb[0].mxu0
    %v1489 = vadd.f32 %v1217, %v1488
    %v1490 = vpop.f32.mrb[0].mxu0
    %1491 = vmatprep.mubr.bf16.mxu0 0
    %1492 = vmatmul.mubr.bf16.gmra.mrb[0].mxu0 %v1188
    %v1493 = vpop.f32.mrb[0].mxu0
    %v1494 = vadd.f32 %v1217, %v1493
    %v1495 = vpop.f32.mrb[0].mxu0
    %v1496 = vpop.f32.mrb[0].mxu0
    %v1497 = vadd.f32 %v1217, %v1496
    %v1498 = vpop.f32.mrb[0].mxu0
    %1499 = vmatprep.mubr.bf16.mxu0 0
    %1500 = vmatmul.mubr.bf16.gmra.mrb[0].mxu0 %v1189
    %v1501 = vpop.f32.mrb[0].mxu0
    %v1502 = vadd.f32 %v1217, %v1501
    %v1503 = vpop.f32.mrb[0].mxu0
    %v1504 = vpop.f32.mrb[0].mxu0
    %v1505 = vadd.f32 %v1217, %v1504
    %v1506 = vpop.f32.mrb[0].mxu0
    %1507 = vmatprep.mubr.bf16.mxu0 0
    %1508 = vmatmul.mubr.bf16.gmra.mrb[0].mxu0 %v1190
    %v1509 = vpop.f32.mrb[0].mxu0
    %v1510 = vadd.f32 %v1217, %v1509
    %v1511 = vpop.f32.mrb[0].mxu0
    %v1512 = vpop.f32.mrb[0].mxu0
    %v1513 = vadd.f32 %v1217, %v1512
    %v1514 = vpop.f32.mrb[0].mxu0
    %1515 = vmatprep.mubr.bf16.mxu0 0
    %1516 = vmatmul.mubr.bf16.gmra.mrb[0].mxu0 %v1191
    %v1517 = vpop.f32.mrb[0].mxu0
    %v1518 = vadd.f32 %v1217, %v1517
    %v1519 = vpop.f32.mrb[0].mxu0
    %v1520 = vpop.f32.mrb[0].mxu0
    %v1521 = vadd.f32 %v1217, %v1520
    %v1522 = vpop.f32.mrb[0].mxu0
    %1523 = vmatprep.mubr.bf16.mxu0 0
    %1524 = vmatmul.mubr.bf16.gmra.mrb[0].mxu0 %v1192
    %v1525 = vpop.f32.mrb[0].mxu0
    %v1526 = vadd.f32 %v1217, %v1525
    %v1527 = vpop.f32.mrb[0].mxu0
    %v1528 = vpop.f32.mrb[0].mxu0
    %v1529 = vadd.f32 %v1217, %v1528
    %v1530 = vpop.f32.mrb[0].mxu0
    %1531 = vmatprep.mubr.bf16.mxu0 0
    %1532 = vmatmul.mubr.bf16.gmra.mrb[0].mxu0 %v1193
    %v1533 = vpop.f32.mrb[0].mxu0
    %v1534 = vadd.f32 %v1217, %v1533
    %v1535 = vpop.f32.mrb[0].mxu0
    %v1536 = vpop.f32.mrb[0].mxu0
    %v1537 = vadd.f32 %v1217, %v1536
    %v1538 = vpop.f32.mrb[0].mxu0
    %1539 = vmatprep.mubr.bf16.mxu0 0
    %1540 = vmatmul.mubr.bf16.gmra.mrb[0].mxu0 %v1194
    %v1541 = vpop.f32.mrb[0].mxu0
    %v1542 = vadd.f32 %v1217, %v1541
    %v1543 = vpop.f32.mrb[0].mxu0
    %v1544 = vpop.f32.mrb[0].mxu0
    %v1545 = vadd.f32 %v1217, %v1544
    %v1546 = vpop.f32.mrb[0].mxu0
    %1547 = vmatprep.mubr.bf16.mxu0 0
    %1548 = vmatmul.mubr.bf16.gmra.mrb[0].mxu0 %v1195
    %v1549 = vpop.f32.mrb[0].mxu0
    %v1550 = vadd.f32 %v1217, %v1549
    %v1551 = vpop.f32.mrb[0].mxu0
    %v1552 = vpop.f32.mrb[0].mxu0
    %v1553 = vadd.f32 %v1217, %v1552
    %v1554 = vpop.f32.mrb[0].mxu0
    %1555 = vdwg.mxu0
    %1556 = vst [vmem:[#allocation2] sm:$0xff] %v1302
    %1557 = vst [vmem:[#allocation2 + $0x8] sm:$0xff] %v1305
    %1558 = vst [vmem:[#allocation2 + $0x10] sm:$0xff] %v1310
    %1559 = vst [vmem:[#allocation2 + $0x18] sm:$0xff] %v1313
    %1560 = vst [vmem:[#allocation2 + $0x20] sm:$0xff] %v1318
    %1561 = vst [vmem:[#allocation2 + $0x28] sm:$0xff] %v1321
    %1562 = vst [vmem:[#allocation2 + $0x30] sm:$0xff] %v1326
    %1563 = vst [vmem:[#allocation2 + $0x38] sm:$0xff] %v1329
    %1564 = vst [vmem:[#allocation2 + $0x40] sm:$0xff] %v1334
    %1565 = vst [vmem:[#allocation2 + $0x48] sm:$0xff] %v1337
    %1566 = vst [vmem:[#allocation2 + $0x50] sm:$0xff] %v1342
    %1567 = vst [vmem:[#allocation2 + $0x58] sm:$0xff] %v1345
    %1568 = vst [vmem:[#allocation2 + $0x60] sm:$0xff] %v1350
    %1569 = vst [vmem:[#allocation2 + $0x68] sm:$0xff] %v1353
    %1570 = vst [vmem:[#allocation2 + $0x70] sm:$0xff] %v1358
    %1571 = vst [vmem:[#allocation2 + $0x78] sm:$0xff] %v1361
    %1572 = vst [vmem:[#allocation2 + $0x80] sm:$0xff] %v1366
    %1573 = vst [vmem:[#allocation2 + $0x88] sm:$0xff] %v1369
    %1574 = vst [vmem:[#allocation2 + $0x90] sm:$0xff] %v1374
    %1575 = vst [vmem:[#allocation2 + $0x98] sm:$0xff] %v1377
    %1576 = vst [vmem:[#allocation2 + $0xa0] sm:$0xff] %v1382
    %1577 = vst [vmem:[#allocation2 + $0xa8] sm:$0xff] %v1385
    %1578 = vst [vmem:[#allocation2 + $0xb0] sm:$0xff] %v1390
    %1579 = vst [vmem:[#allocation2 + $0xb8] sm:$0xff] %v1393
    %1580 = vst [vmem:[#allocation2 + $0xc0] sm:$0xff] %v1398
    %1581 = vst [vmem:[#allocation2 + $0xc8] sm:$0xff] %v1401
    %1582 = vst [vmem:[#allocation2 + $0xd0] sm:$0xff] %v1406
    %1583 = vst [vmem:[#allocation2 + $0xd8] sm:$0xff] %v1409
    %1584 = vst [vmem:[#allocation2 + $0xe0] sm:$0xff] %v1414
    %1585 = vst [vmem:[#allocation2 + $0xe8] sm:$0xff] %v1417
    %1586 = vst [vmem:[#allocation2 + $0xf0] sm:$0xff] %v1422
    %1587 = vst [vmem:[#allocation2 + $0xf8] sm:$0xff] %v1425
    %1588 = vst [vmem:[#allocation2 + $0x100] sm:$0xff] %v1430
    %1589 = vst [vmem:[#allocation2 + $0x108] sm:$0xff] %v1433
    %1590 = vst [vmem:[#allocation2 + $0x110] sm:$0xff] %v1438
    %1591 = vst [vmem:[#allocation2 + $0x118] sm:$0xff] %v1441
    %1592 = vst [vmem:[#allocation2 + $0x120] sm:$0xff] %v1446
    %1593 = vst [vmem:[#allocation2 + $0x128] sm:$0xff] %v1449
    %1594 = vst [vmem:[#allocation2 + $0x130] sm:$0xff] %v1454
    %1595 = vst [vmem:[#allocation2 + $0x138] sm:$0xff] %v1457
    %1596 = vst [vmem:[#allocation2 + $0x140] sm:$0xff] %v1462
    %1597 = vst [vmem:[#allocation2 + $0x148] sm:$0xff] %v1465
    %1598 = vst [vmem:[#allocation2 + $0x150] sm:$0xff] %v1470
    %1599 = vst [vmem:[#allocation2 + $0x158] sm:$0xff] %v1473
    %1600 = vst [vmem:[#allocation2 + $0x160] sm:$0xff] %v1478
    %1601 = vst [vmem:[#allocation2 + $0x168] sm:$0xff] %v1481
    %1602 = vst [vmem:[#allocation2 + $0x170] sm:$0xff] %v1486
    %1603 = vst [vmem:[#allocation2 + $0x178] sm:$0xff] %v1489
    %1604 = vst [vmem:[#allocation2 + $0x180] sm:$0xff] %v1494
    %1605 = vst [vmem:[#allocation2 + $0x188] sm:$0xff] %v1497
    %1606 = vst [vmem:[#allocation2 + $0x190] sm:$0xff] %v1502
    %1607 = vst [vmem:[#allocation2 + $0x198] sm:$0xff] %v1505
    %1608 = vst [vmem:[#allocation2 + $0x1a0] sm:$0xff] %v1510
    %1609 = vst [vmem:[#allocation2 + $0x1a8] sm:$0xff] %v1513
    %1610 = vst [vmem:[#allocation2 + $0x1b0] sm:$0xff] %v1518
    %1611 = vst [vmem:[#allocation2 + $0x1b8] sm:$0xff] %v1521
    %1612 = vst [vmem:[#allocation2 + $0x1c0] sm:$0xff] %v1526
    %1613 = vst [vmem:[#allocation2 + $0x1c8] sm:$0xff] %v1529
    %1614 = vst [vmem:[#allocation2 + $0x1d0] sm:$0xff] %v1534
    %1615 = vst [vmem:[#allocation2 + $0x1d8] sm:$0xff] %v1537
    %1616 = vst [vmem:[#allocation2 + $0x1e0] sm:$0xff] %v1542
    %1617 = vst [vmem:[#allocation2 + $0x1e8] sm:$0xff] %v1545
    %1618 = vst [vmem:[#allocation2 + $0x1f0] sm:$0xff] %v1550
    %1619 = vst [vmem:[#allocation2 + $0x1f8] sm:$0xff] %v1553
    // Predicated region
    $region30: #{dqn_forward_padded.1} parent=1 // pred_check
      _
    $region31: #{dqn_forward_padded.1} parent=1 // pred_check_branch
      %1621 = sbr.rel (0) target = $region33
    $region32: #{dqn_forward_padded.1} parent=1 // pred_region
      %s1623 = ssub.s32 8192, 8192
      %1624 = vsyncadd [#allocation3], %s1623
      %s1625 = sshll.u32 [#allocation2], 4
      %s1626 = int_to_ptr.vmem [resolvable:$true] %s1625
      %1631 = dma.vmem_to_hbm [thread:$0]  %s1626, 8192, %s7, [#allocation3], 128, 128, 8
    $region33: #{dqn_forward_padded.1} parent=1 // pred_fallthru
      _
    // Predicated region
    $region34: #{dqn_forward_padded.1} parent=1 // pred_check
      _
    $region35: #{dqn_forward_padded.1} parent=1 // pred_check_branch
      %1633 = sbr.rel (0) target = $region37
    $region36: #{dqn_forward_padded.1} parent=1 // pred_region
      %1634 = dma.done [#allocation3], 8192
    $region37: #{dqn_forward_padded.1} parent=1 // pred_fallthru
      _
    %1635 = vsyncpa [#allocation3], 1

</llo_original>
